<compile_context>
chip_gen: v7x
topology: tpu7x:2x2x1
jax: 0.10.0
libtpu: 0.0.40
codegen_flags: <defaults>
</compile_context>

<pallas_src>
import functools

import jax
import jax.numpy as jnp
from jax.experimental import pallas as pl
from jax.experimental.pallas import tpu as pltpu


# ----------------------------- Pallas kernel ------------------------------- #

def _dilate_attn_kernel(q_ref, k_ref, v_ref, o_ref, k_pad_ref, v_pad_ref, *,
                        scale, W, Lpad, margin, offsets):
    # q_ref/k_ref/v_ref/o_ref : (gblk, hd, Lpad)   lanes = flattened H*W (zero-padded)
    # k_pad_ref/v_pad_ref     : (gblk, hd, Lpad + 2*margin) f32 VMEM scratch
    gblk, hd, _ = q_ref.shape

    # Fold the softmax scale into q once.
    q = q_ref[...].astype(jnp.float32) * scale

    # Stage K/V into the zero-margined scratch.  Margins are re-zeroed every
    # step (tiny stores) so this is safe when the grid is sharded across cores.
    zeros_margin = jnp.zeros((gblk, hd, margin), jnp.float32)
    k_pad_ref[:, :, :margin] = zeros_margin
    k_pad_ref[:, :, margin + Lpad:] = zeros_margin
    v_pad_ref[:, :, :margin] = zeros_margin
    v_pad_ref[:, :, margin + Lpad:] = zeros_margin
    k_pad_ref[:, :, margin:margin + Lpad] = k_ref[...].astype(jnp.float32)
    v_pad_ref[:, :, margin:margin + Lpad] = v_ref[...].astype(jnp.float32)

    # One (1, 1, Lpad) horizontal-wrap mask per distinct column offset.
    col = jax.lax.broadcasted_iota(jnp.int32, (1, 1, Lpad), 2) % W
    col_mask = {}
    for _, dw in offsets:
        if dw != 0 and dw not in col_mask:
            col_mask[dw] = ((col + dw >= 0) & (col + dw < W)).astype(jnp.float32)

    # Single pass over the KK neighbors: compute each reduced score once and
    # cache it.  The mask is applied to the reduced score (zero-key semantics,
    # identical to masking K since the mask is constant over head_dim).
    scores = []
    for start, dw in offsets:
        red = jnp.sum(q * k_pad_ref[:, :, start:start + Lpad],
                      axis=1, keepdims=True)              # (gblk, 1, Lpad)
        scores.append(red if dw == 0 else col_mask[dw] * red)

    m = scores[0]
    for sc in scores[1:]:
        m = jnp.maximum(m, sc)

    # exp / denominator / weighted-V accumulation, reusing the cached scores.
    denom = jnp.zeros_like(m)
    acc = jnp.zeros_like(q)
    for sc, (start, dw) in zip(scores, offsets):
        e = jnp.exp(sc - m)                               # EUP
        denom = denom + e
        w = e if dw == 0 else e * col_mask[dw]            # mask the weight row only
        acc = acc + w * v_pad_ref[:, :, start:start + Lpad]

    # TODO(synk): attn_drop has p=0.0 in the module -> identity, not emitted.
    o_ref[...] = (acc * pl.reciprocal(denom, approx=True)).astype(o_ref.dtype)


# ------------------------------- wrapper ----------------------------------- #

def dilate_attention(q, k, v, head_dim, kernel_size=3, dilation=1,
                     qk_scale=None, vmem_budget_bytes=8 * 1024 * 1024):
    """Pallas forward of DilateAttention. q/k/v: (B, d, H, W) -> (B, H, W, d)."""
    B, d, H, W = q.shape
    assert d % head_dim == 0
    nh = d // head_dim
    L = H * W
    G = B * nh
    pad = dilation * (kernel_size - 1) // 2
    margin = pad * W + pad
    KK = kernel_size * kernel_size
    scale = float(qk_scale) if qk_scale is not None else head_dim ** (-0.5)
    out_dtype = q.dtype

    # Lane-dense last dim (multiple of 128); no-op when H*W is already aligned.
    Lpad = ((L + 127) // 128) * 128

    # (B, d, H, W) -> (G, hd, L): pure reshape, no transpose (d = nh*hd contiguous).
    qf = q.reshape(G, head_dim, L)
    kf = k.reshape(G, head_dim, L)
    vf = v.reshape(G, head_dim, L)
    if Lpad != L:
        padw = ((0, 0), (0, 0), (0, Lpad - L))
        qf, kf, vf = jnp.pad(qf, padw), jnp.pad(kf, padw), jnp.pad(vf, padw)

    # Group-block sized from a VMEM budget (double-buffered q/k/v/o blocks,
    # zero-margined K/V scratch, cached scores + accumulator), kept small enough
    # that the grid has >= 2 steps (both TensorCores on v7x), with G padded up to
    # a multiple of gblk instead of falling back to tiny divisors.
    itemsize = jnp.dtype(out_dtype).itemsize
    bytes_per_group = (
        4 * 2 * head_dim * Lpad * itemsize             # q,k,v,o blocks, double-buffered
        + 2 * head_dim * (Lpad + 2 * margin) * 4       # K/V margin scratch (f32)
        + (KK + 2) * Lpad * 4                          # cached scores + softmax stats
        + 2 * head_dim * Lpad * 4)                     # accumulator + temporaries
    gblk = max(1, min(G, vmem_budget_bytes // bytes_per_group))
    if G >= 2:
        gblk = min(gblk, (G + 1) // 2)                 # keep at least 2 grid steps
    Gpad = ((G + gblk - 1) // gblk) * gblk
    if Gpad != G:
        padg = ((0, Gpad - G), (0, 0), (0, 0))
        qf, kf, vf = jnp.pad(qf, padg), jnp.pad(kf, padg), jnp.pad(vf, padg)
    grid = (Gpad // gblk,)

    # Static (slice_start_in_padded_scratch, column_offset) per window position.
    offsets = tuple(
        (margin + (i * dilation - pad) * W + (j * dilation - pad), j * dilation - pad)
        for i in range(kernel_size) for j in range(kernel_size))

    out = pl.pallas_call(
        functools.partial(_dilate_attn_kernel, scale=scale, W=W, Lpad=Lpad,
                          margin=margin, offsets=offsets),
        out_shape=jax.ShapeDtypeStruct((Gpad, head_dim, Lpad), out_dtype),
        grid=grid,
        in_specs=[
            pl.BlockSpec((gblk, head_dim, Lpad), lambda g: (g, 0, 0)),
            pl.BlockSpec((gblk, head_dim, Lpad), lambda g: (g, 0, 0)),
            pl.BlockSpec((gblk, head_dim, Lpad), lambda g: (g, 0, 0)),
        ],
        out_specs=pl.BlockSpec((gblk, head_dim, Lpad), lambda g: (g, 0, 0)),
        scratch_shapes=[
            pltpu.VMEM((gblk, head_dim, Lpad + 2 * margin), jnp.float32),
            pltpu.VMEM((gblk, head_dim, Lpad + 2 * margin), jnp.float32),
        ],
        compiler_params=pltpu.CompilerParams(
            dimension_semantics=("parallel",),
            vmem_limit_bytes=32 * 1024 * 1024,
        ),
    )(qf, kf, vf)

    out = out[:G, :, :L]
    # (G, hd, L) -> (B, H, W, d) with channel order (head, head_dim), matching
    # (attn @ v).transpose(1, 2).reshape(B, H, W, d) in the PyTorch module.
    out = out.reshape(B, nh, head_dim, H, W).transpose(0, 3, 4, 1, 2)
    return out.reshape(B, H, W, d)


# ----------------------- pure-JAX reference (for check) -------------------- #

def _unfold_dilated(x, kernel_size, dilation):
    """nn.Unfold(kernel_size, dilation, dilation*(k-1)//2, 1): (B,d,H,W)->(B,d,KK,H,W)."""
    B, d, H, W = x.shape
    pad = dilation * (kernel_size - 1) // 2
    xp = jnp.pad(x, ((0, 0), (0, 0), (pad, pad), (pad, pad)))
    patches = [xp[:, :, i * dilation:i * dilation + H, j * dilation:j * dilation + W]
               for i in range(kernel_size) for j in range(kernel_size)]
    return jnp.stack(patches, axis=2)


def reference_dilate_attention(q, k, v, head_dim, kernel_size, dilation,
                               qk_scale=None):
    B, d, H, W = q.shape
    nh = d // head_dim
    KK = kernel_size * kernel_size
    L = H * W
    scale = qk_scale if qk_scale is not None else head_dim ** (-0.5)
    qr = q.reshape(B, nh, head_dim, 1, L).transpose(0, 1, 4, 3, 2)          # (B,nh,L,1,hd)
    ku = _unfold_dilated(k, kernel_size, dilation).reshape(
        B, nh, head_dim, KK, L).transpose(0, 1, 4, 2, 3)                    # (B,nh,L,hd,KK)
    attn = jax.nn.softmax(jnp.matmul(qr, ku) * scale, axis=-1)              # (B,nh,L,1,KK)
    vu = _unfold_dilated(v, kernel_size, dilation).reshape(
        B, nh, head_dim, KK, L).transpose(0, 1, 4, 3, 2)                    # (B,nh,L,KK,hd)
    x = jnp.matmul(attn, vu)                                                # (B,nh,L,1,hd)
    return x.transpose(0, 2, 1, 3, 4).reshape(B, H, W, d)


# --------------------------------- main ------------------------------------ #

if __name__ == "__main__":
    B, d, H, W = 2, 32, 16, 16
    head_dim = 8
    kernel_size = 3

    key = jax.random.PRNGKey(0)
    kq, kk_, kv = jax.random.split(key, 3)
    q = jax.random.normal(kq, (B, d, H, W), jnp.float32)
    k = jax.random.normal(kk_, (B, d, H, W), jnp.float32)
    v = jax.random.normal(kv, (B, d, H, W), jnp.float32)

    for dilation in (1, 2):
        fwd = jax.jit(functools.partial(
            dilate_attention, head_dim=head_dim, kernel_size=kernel_size,
            dilation=dilation))
        out = jax.block_until_ready(fwd(q, k, v))
        assert out.shape == (B, H, W, d), out.shape

        ref = jax.block_until_ready(
            reference_dilate_attention(q, k, v, head_dim, kernel_size, dilation))
        max_err = float(jnp.max(jnp.abs(out - ref)))
        assert jnp.allclose(out, ref, atol=2e-3, rtol=1e-2), max_err

    print("KERNEL_OK")
</pallas_src>

<mosaic_0001>
module attributes {stable_mosaic.version = 11 : i64} {
  func.func @_dilate_attn_kernel(%arg0: i32, %arg1: memref<4x8x256xf32, #tpu.memory_space<vmem>>, %arg2: memref<4x8x256xf32, #tpu.memory_space<vmem>>, %arg3: memref<4x8x256xf32, #tpu.memory_space<vmem>>, %arg4: memref<4x8x256xf32, #tpu.memory_space<vmem>>, %arg5: memref<4x8x290xf32, #tpu.memory_space<vmem>>, %arg6: memref<4x8x290xf32, #tpu.memory_space<vmem>>) attributes {dimension_semantics = [#tpu.dimension_semantics<parallel>], iteration_bounds = array<i64: 2>, scalar_prefetch = 0 : i64, scratch_operands = 2 : i64, tpu.core_type = #tpu.core_type<tc>, window_params = [{transform_indices = @transform_0, window_bounds = array<i64: 4, 8, 256>}, {transform_indices = @transform_1, window_bounds = array<i64: 4, 8, 256>}, {transform_indices = @transform_2, window_bounds = array<i64: 4, 8, 256>}, {transform_indices = @transform_3, window_bounds = array<i64: 4, 8, 256>}]} {
    %c0 = arith.constant 0 : index
    %c0_0 = arith.constant 0 : index
    %c0_1 = arith.constant 0 : index
    %0 = vector.load %arg1[%c0, %c0_0, %c0_1] : memref<4x8x256xf32, #tpu.memory_space<vmem>>, vector<4x8x256xf32>
    %cst = arith.constant 0.353553385 : f32
    %1 = vector.broadcast %cst : f32 to vector<4x8x256xf32>
    %2 = arith.mulf %0, %1 : vector<4x8x256xf32>
    %cst_2 = arith.constant 0.000000e+00 : f32
    %3 = vector.broadcast %cst_2 : f32 to vector<4x8x17xf32>
    %c0_3 = arith.constant 0 : index
    %c0_4 = arith.constant 0 : index
    %c0_5 = arith.constant 0 : index
    %4 = vector.load %arg5[%c0_3, %c0_4, %c0_5] : memref<4x8x290xf32, #tpu.memory_space<vmem>>, vector<4x8x17xf32>
    tpu.vector_store %arg5[%c0_3, %c0_4, %c0_5], %3 {strides = array<i32>} : memref<4x8x290xf32, #tpu.memory_space<vmem>>, vector<4x8x17xf32>,
    %c0_6 = arith.constant 0 : index
    %c0_7 = arith.constant 0 : index
    %c273 = arith.constant 273 : index
    %5 = vector.load %arg5[%c0_6, %c0_7, %c273] : memref<4x8x290xf32, #tpu.memory_space<vmem>>, vector<4x8x17xf32>
    tpu.vector_store %arg5[%c0_6, %c0_7, %c273], %3 {strides = array<i32>} : memref<4x8x290xf32, #tpu.memory_space<vmem>>, vector<4x8x17xf32>,
    %c0_8 = arith.constant 0 : index
    %c0_9 = arith.constant 0 : index
    %c0_10 = arith.constant 0 : index
    %6 = vector.load %arg6[%c0_8, %c0_9, %c0_10] : memref<4x8x290xf32, #tpu.memory_space<vmem>>, vector<4x8x17xf32>
    tpu.vector_store %arg6[%c0_8, %c0_9, %c0_10], %3 {strides = array<i32>} : memref<4x8x290xf32, #tpu.memory_space<vmem>>, vector<4x8x17xf32>,
    %c0_11 = arith.constant 0 : index
    %c0_12 = arith.constant 0 : index
    %c273_13 = arith.constant 273 : index
    %7 = vector.load %arg6[%c0_11, %c0_12, %c273_13] : memref<4x8x290xf32, #tpu.memory_space<vmem>>, vector<4x8x17xf32>
    tpu.vector_store %arg6[%c0_11, %c0_12, %c273_13], %3 {strides = array<i32>} : memref<4x8x290xf32, #tpu.memory_space<vmem>>, vector<4x8x17xf32>,
    %c0_14 = arith.constant 0 : index
    %c0_15 = arith.constant 0 : index
    %c0_16 = arith.constant 0 : index
    %8 = vector.load %arg2[%c0_14, %c0_15, %c0_16] : memref<4x8x256xf32, #tpu.memory_space<vmem>>, vector<4x8x256xf32>
    %c0_17 = arith.constant 0 : index
    %c0_18 = arith.constant 0 : index
    %c17 = arith.constant 17 : index
    %9 = vector.load %arg5[%c0_17, %c0_18, %c17] : memref<4x8x290xf32, #tpu.memory_space<vmem>>, vector<4x8x256xf32>
    tpu.vector_store %arg5[%c0_17, %c0_18, %c17], %8 {strides = array<i32>} : memref<4x8x290xf32, #tpu.memory_space<vmem>>, vector<4x8x256xf32>,
    %c0_19 = arith.constant 0 : index
    %c0_20 = arith.constant 0 : index
    %c0_21 = arith.constant 0 : index
    %10 = vector.load %arg3[%c0_19, %c0_20, %c0_21] : memref<4x8x256xf32, #tpu.memory_space<vmem>>, vector<4x8x256xf32>
    %c0_22 = arith.constant 0 : index
    %c0_23 = arith.constant 0 : index
    %c17_24 = arith.constant 17 : index
    %11 = vector.load %arg6[%c0_22, %c0_23, %c17_24] : memref<4x8x290xf32, #tpu.memory_space<vmem>>, vector<4x8x256xf32>
    tpu.vector_store %arg6[%c0_22, %c0_23, %c17_24], %10 {strides = array<i32>} : memref<4x8x290xf32, #tpu.memory_space<vmem>>, vector<4x8x256xf32>,
    %12 = tpu.iota {dimensions = array<i32: 2>} : vector<1x1x256xi32>
    %c16_i32 = arith.constant 16 : i32
    %c0_i32 = arith.constant 0 : i32
    %13 = arith.cmpi eq, %c16_i32, %c0_i32 : i32
    %c1_i32 = arith.constant 1 : i32
    %14 = arith.select %13, %c1_i32, %c16_i32 : i32
    %15 = vector.broadcast %14 : i32 to vector<1x1x256xi32>
    %16 = arith.remsi %12, %15 : vector<1x1x256xi32>
    %c0_i32_25 = arith.constant 0 : i32
    %17 = vector.broadcast %c0_i32_25 : i32 to vector<1x1x256xi32>
    %18 = arith.cmpi ne, %16, %17 : vector<1x1x256xi32>
    %c0_i32_26 = arith.constant 0 : i32
    %19 = vector.broadcast %c0_i32_26 : i32 to vector<1x1x256xi32>
    %20 = arith.cmpi slt, %16, %19 : vector<1x1x256xi32>
    %c0_i32_27 = arith.constant 0 : i32
    %21 = arith.cmpi slt, %14, %c0_i32_27 : i32
    %22 = vector.broadcast %21 : i1 to vector<1x1x256xi1>
    %23 = vector.broadcast %22 : vector<1x1x256xi1> to vector<1x1x256xi1>
    %24 = arith.xori %20, %23 : vector<1x1x256xi1>
    %25 = arith.andi %24, %18 : vector<1x1x256xi1>
    %26 = vector.broadcast %14 : i32 to vector<1x1x256xi32>
    %27 = arith.addi %16, %26 : vector<1x1x256xi32>
    %28 = arith.select %25, %27, %16 : vector<1x1x256xi1>, vector<1x1x256xi32>
    %c-1_i32 = arith.constant -1 : i32
    %29 = vector.broadcast %c-1_i32 : i32 to vector<1x1x256xi32>
    %30 = arith.addi %28, %29 : vector<1x1x256xi32>
    %c0_i32_28 = arith.constant 0 : i32
    %31 = vector.broadcast %c0_i32_28 : i32 to vector<1x1x256xi32>
    %32 = arith.cmpi sge, %30, %31 : vector<1x1x256xi32>
    %c-1_i32_29 = arith.constant -1 : i32
    %33 = vector.broadcast %c-1_i32_29 : i32 to vector<1x1x256xi32>
    %34 = arith.addi %28, %33 : vector<1x1x256xi32>
    %c16_i32_30 = arith.constant 16 : i32
    %35 = vector.broadcast %c16_i32_30 : i32 to vector<1x1x256xi32>
    %36 = arith.cmpi slt, %34, %35 : vector<1x1x256xi32>
    %37 = arith.andi %32, %36 : vector<1x1x256xi1>
    %38 = arith.extui %37 : vector<1x1x256xi1> to vector<1x1x256xi32>
    %39 = arith.sitofp %38 : vector<1x1x256xi32> to vector<1x1x256xf32>
    %c1_i32_31 = arith.constant 1 : i32
    %40 = vector.broadcast %c1_i32_31 : i32 to vector<1x1x256xi32>
    %41 = arith.addi %28, %40 : vector<1x1x256xi32>
    %c0_i32_32 = arith.constant 0 : i32
    %42 = vector.broadcast %c0_i32_32 : i32 to vector<1x1x256xi32>
    %43 = arith.cmpi sge, %41, %42 : vector<1x1x256xi32>
    %c1_i32_33 = arith.constant 1 : i32
    %44 = vector.broadcast %c1_i32_33 : i32 to vector<1x1x256xi32>
    %45 = arith.addi %28, %44 : vector<1x1x256xi32>
    %c16_i32_34 = arith.constant 16 : i32
    %46 = vector.broadcast %c16_i32_34 : i32 to vector<1x1x256xi32>
    %47 = arith.cmpi slt, %45, %46 : vector<1x1x256xi32>
    %48 = arith.andi %43, %47 : vector<1x1x256xi1>
    %49 = arith.extui %48 : vector<1x1x256xi1> to vector<1x1x256xi32>
    %50 = arith.sitofp %49 : vector<1x1x256xi32> to vector<1x1x256xf32>
    %c0_35 = arith.constant 0 : index
    %c0_36 = arith.constant 0 : index
    %c0_37 = arith.constant 0 : index
    %51 = vector.load %arg5[%c0_35, %c0_36, %c0_37] : memref<4x8x290xf32, #tpu.memory_space<vmem>>, vector<4x8x256xf32>
    %52 = arith.mulf %2, %51 : vector<4x8x256xf32>
    %cst_38 = arith.constant dense<0.000000e+00> : vector<4x256xf32>
    %53 = vector.multi_reduction <add>, %52, %cst_38 [1] : vector<4x8x256xf32> to vector<4x256xf32>
    %54 = vector.shape_cast %53 : vector<4x256xf32> to vector<4x1x256xf32>
    %55 = vector.broadcast %39 : vector<1x1x256xf32> to vector<4x1x256xf32>
    %56 = arith.mulf %55, %54 : vector<4x1x256xf32>
    %c0_39 = arith.constant 0 : index
    %c0_40 = arith.constant 0 : index
    %c1 = arith.constant 1 : index
    %57 = vector.load %arg5[%c0_39, %c0_40, %c1] : memref<4x8x290xf32, #tpu.memory_space<vmem>>, vector<4x8x256xf32>
    %58 = arith.mulf %2, %57 : vector<4x8x256xf32>
    %cst_41 = arith.constant dense<0.000000e+00> : vector<4x256xf32>
    %59 = vector.multi_reduction <add>, %58, %cst_41 [1] : vector<4x8x256xf32> to vector<4x256xf32>
    %60 = vector.shape_cast %59 : vector<4x256xf32> to vector<4x1x256xf32>
    %c0_42 = arith.constant 0 : index
    %c0_43 = arith.constant 0 : index
    %c2 = arith.constant 2 : index
    %61 = vector.load %arg5[%c0_42, %c0_43, %c2] : memref<4x8x290xf32, #tpu.memory_space<vmem>>, vector<4x8x256xf32>
    %62 = arith.mulf %2, %61 : vector<4x8x256xf32>
    %cst_44 = arith.constant dense<0.000000e+00> : vector<4x256xf32>
    %63 = vector.multi_reduction <add>, %62, %cst_44 [1] : vector<4x8x256xf32> to vector<4x256xf32>
    %64 = vector.shape_cast %63 : vector<4x256xf32> to vector<4x1x256xf32>
    %65 = vector.broadcast %50 : vector<1x1x256xf32> to vector<4x1x256xf32>
    %66 = arith.mulf %65, %64 : vector<4x1x256xf32>
    %c0_45 = arith.constant 0 : index
    %c0_46 = arith.constant 0 : index
    %c16 = arith.constant 16 : index
    %67 = vector.load %arg5[%c0_45, %c0_46, %c16] : memref<4x8x290xf32, #tpu.memory_space<vmem>>, vector<4x8x256xf32>
    %68 = arith.mulf %2, %67 : vector<4x8x256xf32>
    %cst_47 = arith.constant dense<0.000000e+00> : vector<4x256xf32>
    %69 = vector.multi_reduction <add>, %68, %cst_47 [1] : vector<4x8x256xf32> to vector<4x256xf32>
    %70 = vector.shape_cast %69 : vector<4x256xf32> to vector<4x1x256xf32>
    %71 = vector.broadcast %39 : vector<1x1x256xf32> to vector<4x1x256xf32>
    %72 = arith.mulf %71, %70 : vector<4x1x256xf32>
    %c0_48 = arith.constant 0 : index
    %c0_49 = arith.constant 0 : index
    %c17_50 = arith.constant 17 : index
    %73 = vector.load %arg5[%c0_48, %c0_49, %c17_50] : memref<4x8x290xf32, #tpu.memory_space<vmem>>, vector<4x8x256xf32>
    %74 = arith.mulf %2, %73 : vector<4x8x256xf32>
    %cst_51 = arith.constant dense<0.000000e+00> : vector<4x256xf32>
    %75 = vector.multi_reduction <add>, %74, %cst_51 [1] : vector<4x8x256xf32> to vector<4x256xf32>
    %76 = vector.shape_cast %75 : vector<4x256xf32> to vector<4x1x256xf32>
    %c0_52 = arith.constant 0 : index
    %c0_53 = arith.constant 0 : index
    %c18 = arith.constant 18 : index
    %77 = vector.load %arg5[%c0_52, %c0_53, %c18] : memref<4x8x290xf32, #tpu.memory_space<vmem>>, vector<4x8x256xf32>
    %78 = arith.mulf %2, %77 : vector<4x8x256xf32>
    %cst_54 = arith.constant dense<0.000000e+00> : vector<4x256xf32>
    %79 = vector.multi_reduction <add>, %78, %cst_54 [1] : vector<4x8x256xf32> to vector<4x256xf32>
    %80 = vector.shape_cast %79 : vector<4x256xf32> to vector<4x1x256xf32>
    %81 = vector.broadcast %50 : vector<1x1x256xf32> to vector<4x1x256xf32>
    %82 = arith.mulf %81, %80 : vector<4x1x256xf32>
    %c0_55 = arith.constant 0 : index
    %c0_56 = arith.constant 0 : index
    %c32 = arith.constant 32 : index
    %83 = vector.load %arg5[%c0_55, %c0_56, %c32] : memref<4x8x290xf32, #tpu.memory_space<vmem>>, vector<4x8x256xf32>
    %84 = arith.mulf %2, %83 : vector<4x8x256xf32>
    %cst_57 = arith.constant dense<0.000000e+00> : vector<4x256xf32>
    %85 = vector.multi_reduction <add>, %84, %cst_57 [1] : vector<4x8x256xf32> to vector<4x256xf32>
    %86 = vector.shape_cast %85 : vector<4x256xf32> to vector<4x1x256xf32>
    %87 = vector.broadcast %39 : vector<1x1x256xf32> to vector<4x1x256xf32>
    %88 = arith.mulf %87, %86 : vector<4x1x256xf32>
    %c0_58 = arith.constant 0 : index
    %c0_59 = arith.constant 0 : index
    %c33 = arith.constant 33 : index
    %89 = vector.load %arg5[%c0_58, %c0_59, %c33] : memref<4x8x290xf32, #tpu.memory_space<vmem>>, vector<4x8x256xf32>
    %90 = arith.mulf %2, %89 : vector<4x8x256xf32>
    %cst_60 = arith.constant dense<0.000000e+00> : vector<4x256xf32>
    %91 = vector.multi_reduction <add>, %90, %cst_60 [1] : vector<4x8x256xf32> to vector<4x256xf32>
    %92 = vector.shape_cast %91 : vector<4x256xf32> to vector<4x1x256xf32>
    %c0_61 = arith.constant 0 : index
    %c0_62 = arith.constant 0 : index
    %c34 = arith.constant 34 : index
    %93 = vector.load %arg5[%c0_61, %c0_62, %c34] : memref<4x8x290xf32, #tpu.memory_space<vmem>>, vector<4x8x256xf32>
    %94 = arith.mulf %2, %93 : vector<4x8x256xf32>
    %cst_63 = arith.constant dense<0.000000e+00> : vector<4x256xf32>
    %95 = vector.multi_reduction <add>, %94, %cst_63 [1] : vector<4x8x256xf32> to vector<4x256xf32>
    %96 = vector.shape_cast %95 : vector<4x256xf32> to vector<4x1x256xf32>
    %97 = vector.broadcast %50 : vector<1x1x256xf32> to vector<4x1x256xf32>
    %98 = arith.mulf %97, %96 : vector<4x1x256xf32>
    %99 = arith.maximumf %56, %60 : vector<4x1x256xf32>
    %100 = arith.maximumf %99, %66 : vector<4x1x256xf32>
    %101 = arith.maximumf %100, %72 : vector<4x1x256xf32>
    %102 = arith.maximumf %101, %76 : vector<4x1x256xf32>
    %103 = arith.maximumf %102, %82 : vector<4x1x256xf32>
    %104 = arith.maximumf %103, %88 : vector<4x1x256xf32>
    %105 = arith.maximumf %104, %92 : vector<4x1x256xf32>
    %106 = arith.maximumf %105, %98 : vector<4x1x256xf32>
    %cst_64 = arith.constant 0.000000e+00 : f32
    %107 = vector.broadcast %cst_64 : f32 to vector<4x1x256xf32>
    %cst_65 = arith.constant 0.000000e+00 : f32
    %108 = vector.broadcast %cst_65 : f32 to vector<4x8x256xf32>
    %109 = arith.subf %56, %106 : vector<4x1x256xf32>
    %110 = math.exp %109 : vector<4x1x256xf32>
    %111 = arith.addf %107, %110 : vector<4x1x256xf32>
    %112 = vector.broadcast %39 : vector<1x1x256xf32> to vector<4x1x256xf32>
    %113 = arith.mulf %110, %112 : vector<4x1x256xf32>
    %c0_66 = arith.constant 0 : index
    %c0_67 = arith.constant 0 : index
    %c0_68 = arith.constant 0 : index
    %114 = vector.load %arg6[%c0_66, %c0_67, %c0_68] : memref<4x8x290xf32, #tpu.memory_space<vmem>>, vector<4x8x256xf32>
    %115 = vector.broadcast %113 : vector<4x1x256xf32> to vector<4x8x256xf32>
    %116 = arith.mulf %115, %114 : vector<4x8x256xf32>
    %117 = arith.addf %108, %116 : vector<4x8x256xf32>
    %118 = arith.subf %60, %106 : vector<4x1x256xf32>
    %119 = math.exp %118 : vector<4x1x256xf32>
    %120 = arith.addf %111, %119 : vector<4x1x256xf32>
    %c0_69 = arith.constant 0 : index
    %c0_70 = arith.constant 0 : index
    %c1_71 = arith.constant 1 : index
    %121 = vector.load %arg6[%c0_69, %c0_70, %c1_71] : memref<4x8x290xf32, #tpu.memory_space<vmem>>, vector<4x8x256xf32>
    %122 = vector.broadcast %119 : vector<4x1x256xf32> to vector<4x8x256xf32>
    %123 = arith.mulf %122, %121 : vector<4x8x256xf32>
    %124 = arith.addf %117, %123 : vector<4x8x256xf32>
    %125 = arith.subf %66, %106 : vector<4x1x256xf32>
    %126 = math.exp %125 : vector<4x1x256xf32>
    %127 = arith.addf %120, %126 : vector<4x1x256xf32>
    %128 = vector.broadcast %50 : vector<1x1x256xf32> to vector<4x1x256xf32>
    %129 = arith.mulf %126, %128 : vector<4x1x256xf32>
    %c0_72 = arith.constant 0 : index
    %c0_73 = arith.constant 0 : index
    %c2_74 = arith.constant 2 : index
    %130 = vector.load %arg6[%c0_72, %c0_73, %c2_74] : memref<4x8x290xf32, #tpu.memory_space<vmem>>, vector<4x8x256xf32>
    %131 = vector.broadcast %129 : vector<4x1x256xf32> to vector<4x8x256xf32>
    %132 = arith.mulf %131, %130 : vector<4x8x256xf32>
    %133 = arith.addf %124, %132 : vector<4x8x256xf32>
    %134 = arith.subf %72, %106 : vector<4x1x256xf32>
    %135 = math.exp %134 : vector<4x1x256xf32>
    %136 = arith.addf %127, %135 : vector<4x1x256xf32>
    %137 = vector.broadcast %39 : vector<1x1x256xf32> to vector<4x1x256xf32>
    %138 = arith.mulf %135, %137 : vector<4x1x256xf32>
    %c0_75 = arith.constant 0 : index
    %c0_76 = arith.constant 0 : index
    %c16_77 = arith.constant 16 : index
    %139 = vector.load %arg6[%c0_75, %c0_76, %c16_77] : memref<4x8x290xf32, #tpu.memory_space<vmem>>, vector<4x8x256xf32>
    %140 = vector.broadcast %138 : vector<4x1x256xf32> to vector<4x8x256xf32>
    %141 = arith.mulf %140, %139 : vector<4x8x256xf32>
    %142 = arith.addf %133, %141 : vector<4x8x256xf32>
    %143 = arith.subf %76, %106 : vector<4x1x256xf32>
    %144 = math.exp %143 : vector<4x1x256xf32>
    %145 = arith.addf %136, %144 : vector<4x1x256xf32>
    %c0_78 = arith.constant 0 : index
    %c0_79 = arith.constant 0 : index
    %c17_80 = arith.constant 17 : index
    %146 = vector.load %arg6[%c0_78, %c0_79, %c17_80] : memref<4x8x290xf32, #tpu.memory_space<vmem>>, vector<4x8x256xf32>
    %147 = vector.broadcast %144 : vector<4x1x256xf32> to vector<4x8x256xf32>
    %148 = arith.mulf %147, %146 : vector<4x8x256xf32>
    %149 = arith.addf %142, %148 : vector<4x8x256xf32>
    %150 = arith.subf %82, %106 : vector<4x1x256xf32>
    %151 = math.exp %150 : vector<4x1x256xf32>
    %152 = arith.addf %145, %151 : vector<4x1x256xf32>
    %153 = vector.broadcast %50 : vector<1x1x256xf32> to vector<4x1x256xf32>
    %154 = arith.mulf %151, %153 : vector<4x1x256xf32>
    %c0_81 = arith.constant 0 : index
    %c0_82 = arith.constant 0 : index
    %c18_83 = arith.constant 18 : index
    %155 = vector.load %arg6[%c0_81, %c0_82, %c18_83] : memref<4x8x290xf32, #tpu.memory_space<vmem>>, vector<4x8x256xf32>
    %156 = vector.broadcast %154 : vector<4x1x256xf32> to vector<4x8x256xf32>
    %157 = arith.mulf %156, %155 : vector<4x8x256xf32>
    %158 = arith.addf %149, %157 : vector<4x8x256xf32>
    %159 = arith.subf %88, %106 : vector<4x1x256xf32>
    %160 = math.exp %159 : vector<4x1x256xf32>
    %161 = arith.addf %152, %160 : vector<4x1x256xf32>
    %162 = vector.broadcast %39 : vector<1x1x256xf32> to vector<4x1x256xf32>
    %163 = arith.mulf %160, %162 : vector<4x1x256xf32>
    %c0_84 = arith.constant 0 : index
    %c0_85 = arith.constant 0 : index
    %c32_86 = arith.constant 32 : index
    %164 = vector.load %arg6[%c0_84, %c0_85, %c32_86] : memref<4x8x290xf32, #tpu.memory_space<vmem>>, vector<4x8x256xf32>
    %165 = vector.broadcast %163 : vector<4x1x256xf32> to vector<4x8x256xf32>
    %166 = arith.mulf %165, %164 : vector<4x8x256xf32>
    %167 = arith.addf %158, %166 : vector<4x8x256xf32>
    %168 = arith.subf %92, %106 : vector<4x1x256xf32>
    %169 = math.exp %168 : vector<4x1x256xf32>
    %170 = arith.addf %161, %169 : vector<4x1x256xf32>
    %c0_87 = arith.constant 0 : index
    %c0_88 = arith.constant 0 : index
    %c33_89 = arith.constant 33 : index
    %171 = vector.load %arg6[%c0_87, %c0_88, %c33_89] : memref<4x8x290xf32, #tpu.memory_space<vmem>>, vector<4x8x256xf32>
    %172 = vector.broadcast %169 : vector<4x1x256xf32> to vector<4x8x256xf32>
    %173 = arith.mulf %172, %171 : vector<4x8x256xf32>
    %174 = arith.addf %167, %173 : vector<4x8x256xf32>
    %175 = arith.subf %98, %106 : vector<4x1x256xf32>
    %176 = math.exp %175 : vector<4x1x256xf32>
    %177 = arith.addf %170, %176 : vector<4x1x256xf32>
    %178 = vector.broadcast %50 : vector<1x1x256xf32> to vector<4x1x256xf32>
    %179 = arith.mulf %176, %178 : vector<4x1x256xf32>
    %c0_90 = arith.constant 0 : index
    %c0_91 = arith.constant 0 : index
    %c34_92 = arith.constant 34 : index
    %180 = vector.load %arg6[%c0_90, %c0_91, %c34_92] : memref<4x8x290xf32, #tpu.memory_space<vmem>>, vector<4x8x256xf32>
    %181 = vector.broadcast %179 : vector<4x1x256xf32> to vector<4x8x256xf32>
    %182 = arith.mulf %181, %180 : vector<4x8x256xf32>
    %183 = arith.addf %174, %182 : vector<4x8x256xf32>
    %184 = tpu.reciprocal %177 {approx = true} : vector<4x1x256xf32> -> vector<4x1x256xf32>
    %185 = vector.broadcast %184 : vector<4x1x256xf32> to vector<4x8x256xf32>
    %186 = arith.mulf %183, %185 : vector<4x8x256xf32>
    %c0_93 = arith.constant 0 : index
    %c0_94 = arith.constant 0 : index
    %c0_95 = arith.constant 0 : index
    %187 = vector.load %arg4[%c0_93, %c0_94, %c0_95] : memref<4x8x256xf32, #tpu.memory_space<vmem>>, vector<4x8x256xf32>
    tpu.vector_store %arg4[%c0_93, %c0_94, %c0_95], %186 {strides = array<i32>} : memref<4x8x256xf32, #tpu.memory_space<vmem>>, vector<4x8x256xf32>,
    return
  }
  func.func @transform_0(%arg0: i32) -> (i32, i32, i32) {
    %c0_i32 = arith.constant 0 : i32
    %c0_i32_0 = arith.constant 0 : i32
    %c0_i32_1 = arith.constant 0 : i32
    return %arg0, %c0_i32, %c0_i32_0 : i32, i32, i32
  }
  func.func @transform_1(%arg0: i32) -> (i32, i32, i32) {
    %c0_i32 = arith.constant 0 : i32
    %c0_i32_0 = arith.constant 0 : i32
    %c0_i32_1 = arith.constant 0 : i32
    return %arg0, %c0_i32, %c0_i32_0 : i32, i32, i32
  }
  func.func @transform_2(%arg0: i32) -> (i32, i32, i32) {
    %c0_i32 = arith.constant 0 : i32
    %c0_i32_0 = arith.constant 0 : i32
    %c0_i32_1 = arith.constant 0 : i32
    return %arg0, %c0_i32, %c0_i32_0 : i32, i32, i32
  }
  func.func @transform_3(%arg0: i32) -> (i32, i32, i32) {
    %c0_i32 = arith.constant 0 : i32
    %c0_i32_0 = arith.constant 0 : i32
    %c0_i32_1 = arith.constant 0 : i32
    return %arg0, %c0_i32, %c0_i32_0 : i32, i32, i32
  }
}

</mosaic_0001>

<llo_original>
// kernel: dilate_attention.1
$region0: #{dilate_attention.1}
  #allocation0 [shape = 'u32[]', space=smem, size = 0x4, offset = 0x4, fixed_abs, tag = 'smem constant byte address 0x4 - core index']
  #allocation1 [shape = 'u32[144,128]{1,0:T(1,128)}', space=vmem, size = 0x12000, scoped, tag = 'internal scratch']
  #allocation2 [shape = 'f32[4,8,290]{2,1,0:T(8,128)}', space=vmem, size = 0xc000, scoped, tag = 'scratch operand']
  #allocation3 [shape = 'f32[4,8,290]{2,1,0:T(8,128)}', space=vmem, size = 0xc000, scoped, tag = 'scratch operand']
  %s0 = inlined_call_operand.vmem [shape: f32[8,8,256], index: 0, kind: input, shape index: {}]
  %s1 = inlined_call_operand.vmem [shape: f32[8,8,256], index: 1, kind: input, shape index: {}]
  %s2 = inlined_call_operand.vmem [shape: f32[8,8,256], index: 2, kind: input, shape index: {}]
  %s3 = inlined_call_operand.vmem [shape: f32[8,8,256], index: 3, kind: output, shape index: {}]
  %s4 = sld [smem:[#allocation0]]
  $region45: #{dilate_attention.1} parent=0
    _
  %s6 = ssub.s32 1, %s4
  %s7 = scalar_select 0, %s6, %s4
  loop: start=0, step=1, limit=4
  $region2: #{dilate_attention.1} parent=0 // loop_pre_header
    _
  $region3: #{dilate_attention.1} parent=0 // loop_header
    %s9 = sphi 0, %s13
    %p10 = scmp.ge.s32.totalorder %s9, 4
    %s19 = sphi 0, %s21
    %s22 = sphi 0, %s19
    %s23 = sphi 0, %s22
    %s39 = sphi 0, %s23
    %s45 = sphi 0, %s47
    %s48 = sphi 0, %s45
    %s49 = sphi 0, %s48
    %s65 = sphi 0, %s49
    %s71 = sphi 0, %s73
    %s74 = sphi 0, %s71
    %s75 = sphi 0, %s74
    %s91 = sphi 0, %s75
    %s97 = sphi 0, %s99
    %s100 = sphi 0, %s97
    %s101 = sphi 0, %s100
    %s117 = sphi 0, %s101
  $region4: #{dilate_attention.1} parent=0 // loop_header_branch
    %12 = sbr.rel (%p10) target = $region8
  $region5: #{dilate_attention.1} parent=0 // loop_body
    %s14 = ssub.s32 %s9, 1
    %s15 = ssub.s32 %s9, 2
    %s16 = sadd.s32 %s9, 1
    %s17 = ssub.s32 %s9, %s16
    %p18 = scmp.eq.s32.totalorder %s17, 0
    %s20 = sadd.s32 %s19, 1
    %s21 = scalar_select %p18, %s19, %s20
    %p24 = pneg %p18
    %p25 = scmp.eq.s32.totalorder %s9, 1
    %p26 = por %p24, %p25
    %p27 = scmp.ne.s32.totalorder %s19, %s22
    %p28 = scmp.eq.s32.totalorder %s9, 0
    %p29 = por %p27, %p28
    %p30 = scmp.ne.s32.totalorder %s19, %s22
    %p31 = scmp.eq.s32.totalorder %s14, 1
    %p32 = por %p30, %p31
    %p33 = scmp.ne.s32.totalorder %s22, %s23
    %p34 = scmp.eq.s32.totalorder %s14, 0
    %p35 = por %p33, %p34
    %p36 = scmp.ne.s32.totalorder %s22, %s23
    %p37 = scmp.eq.s32.totalorder %s15, 1
    %p38 = por %p36, %p37
    %p40 = scmp.ne.s32.totalorder %s23, %s39
    %p41 = scmp.eq.s32.totalorder %s15, 0
    %p42 = por %p40, %p41
    %s43 = ssub.s32 %s9, %s16
    %p44 = scmp.eq.s32.totalorder %s43, 0
    %s46 = sadd.s32 %s45, 1
    %s47 = scalar_select %p44, %s45, %s46
    %p50 = pneg %p44
    %p51 = scmp.eq.s32.totalorder %s9, 1
    %p52 = por %p50, %p51
    %p53 = scmp.ne.s32.totalorder %s45, %s48
    %p54 = scmp.eq.s32.totalorder %s9, 0
    %p55 = por %p53, %p54
    %p56 = scmp.ne.s32.totalorder %s45, %s48
    %p57 = scmp.eq.s32.totalorder %s14, 1
    %p58 = por %p56, %p57
    %p59 = scmp.ne.s32.totalorder %s48, %s49
    %p60 = scmp.eq.s32.totalorder %s14, 0
    %p61 = por %p59, %p60
    %p62 = scmp.ne.s32.totalorder %s48, %s49
    %p63 = scmp.eq.s32.totalorder %s15, 1
    %p64 = por %p62, %p63
    %p66 = scmp.ne.s32.totalorder %s49, %s65
    %p67 = scmp.eq.s32.totalorder %s15, 0
    %p68 = por %p66, %p67
    %s69 = ssub.s32 %s9, %s16
    %p70 = scmp.eq.s32.totalorder %s69, 0
    %s72 = sadd.s32 %s71, 1
    %s73 = scalar_select %p70, %s71, %s72
    %p76 = pneg %p70
    %p77 = scmp.eq.s32.totalorder %s9, 1
    %p78 = por %p76, %p77
    %p79 = scmp.ne.s32.totalorder %s71, %s74
    %p80 = scmp.eq.s32.totalorder %s9, 0
    %p81 = por %p79, %p80
    %p82 = scmp.ne.s32.totalorder %s71, %s74
    %p83 = scmp.eq.s32.totalorder %s14, 1
    %p84 = por %p82, %p83
    %p85 = scmp.ne.s32.totalorder %s74, %s75
    %p86 = scmp.eq.s32.totalorder %s14, 0
    %p87 = por %p85, %p86
    %p88 = scmp.ne.s32.totalorder %s74, %s75
    %p89 = scmp.eq.s32.totalorder %s15, 1
    %p90 = por %p88, %p89
    %p92 = scmp.ne.s32.totalorder %s75, %s91
    %p93 = scmp.eq.s32.totalorder %s15, 0
    %p94 = por %p92, %p93
    %s95 = ssub.s32 %s9, %s16
    %p96 = scmp.eq.s32.totalorder %s95, 0
    %s98 = sadd.s32 %s97, 1
    %s99 = scalar_select %p96, %s97, %s98
    %p102 = pneg %p96
    %p103 = scmp.eq.s32.totalorder %s9, 1
    %p104 = por %p102, %p103
    %p105 = scmp.ne.s32.totalorder %s97, %s100
    %p106 = scmp.eq.s32.totalorder %s9, 0
    %p107 = por %p105, %p106
    %p108 = scmp.ne.s32.totalorder %s97, %s100
    %p109 = scmp.eq.s32.totalorder %s14, 1
    %p110 = por %p108, %p109
    %p111 = scmp.ne.s32.totalorder %s100, %s101
    %p112 = scmp.eq.s32.totalorder %s14, 0
    %p113 = por %p111, %p112
    %p114 = scmp.ne.s32.totalorder %s100, %s101
    %p115 = scmp.eq.s32.totalorder %s15, 1
    %p116 = por %p114, %p115
    %p118 = scmp.ne.s32.totalorder %s101, %s117
    %p119 = scmp.eq.s32.totalorder %s15, 0
    %p120 = por %p118, %p119
    %p121 = scmp.le.s32.totalorder 1, %s9
    %p122 = scmp.lt.s32.totalorder %s9, 3
    %p123 = pnand %p121, %p122
    %p124 = pneg %p123
    // Predicated region
    $region9: #{dilate_attention.1} parent=5 // pred_check
      _
    $region10: #{dilate_attention.1} parent=5 // pred_check_branch
      %126 = sbr.rel (%p123) target = $region12
    $region11: #{dilate_attention.1} parent=5 // pred_region
      %s127 = ssub.s32 %s9, 1
    $region12: #{dilate_attention.1} parent=5 // pred_fallthru
      _
    %p128 = scmp.lt.s32.totalorder %s9, 2
    // Predicated region
    $region13: #{dilate_attention.1} parent=5 // pred_check
      %p129 = pneg %p128
    $region14: #{dilate_attention.1} parent=5 // pred_check_branch
      %131 = sbr.rel (%p129) target = $region16
    $region15: #{dilate_attention.1} parent=5 // pred_region
      // Predicated region
      $region17: #{dilate_attention.1} parent=15 // pred_check
        %p132 = pneg %p29
      $region18: #{dilate_attention.1} parent=15 // pred_check_branch
        %134 = sbr.rel (%p132) target = $region20
      $region19: #{dilate_attention.1} parent=15 // pred_region
        %s135 = smul.u32 4, %s9
        %p136 = scmp.lt.s32.totalorder %s135, 7
        %s137 = scalar_select %p136, %s135, 7
        %s138 = smul.addr %s137, 2
        %s139 = smul.addr %s138, 8
        %s140 = scalar_lea.vmem %s0, %s139
        %s141 = smul.u32 4, %s9
      $region20: #{dilate_attention.1} parent=15 // pred_fallthru
        _
      // Predicated region
      $region21: #{dilate_attention.1} parent=15 // pred_check
        %p142 = pneg %p55
      $region22: #{dilate_attention.1} parent=15 // pred_check_branch
        %144 = sbr.rel (%p142) target = $region24
      $region23: #{dilate_attention.1} parent=15 // pred_region
        %s145 = smul.u32 4, %s9
        %p146 = scmp.lt.s32.totalorder %s145, 7
        %s147 = scalar_select %p146, %s145, 7
        %s148 = smul.addr %s147, 2
        %s149 = smul.addr %s148, 8
        %s150 = scalar_lea.vmem %s1, %s149
        %s151 = smul.u32 4, %s9
      $region24: #{dilate_attention.1} parent=15 // pred_fallthru
        _
      // Predicated region
      $region25: #{dilate_attention.1} parent=15 // pred_check
        %p152 = pneg %p81
      $region26: #{dilate_attention.1} parent=15 // pred_check_branch
        %154 = sbr.rel (%p152) target = $region28
      $region27: #{dilate_attention.1} parent=15 // pred_region
        %s155 = smul.u32 4, %s9
        %p156 = scmp.lt.s32.totalorder %s155, 7
        %s157 = scalar_select %p156, %s155, 7
        %s158 = smul.addr %s157, 2
        %s159 = smul.addr %s158, 8
        %s160 = scalar_lea.vmem %s2, %s159
        %s161 = smul.u32 4, %s9
      $region28: #{dilate_attention.1} parent=15 // pred_fallthru
        _
    $region16: #{dilate_attention.1} parent=5 // pred_fallthru
      _
    %p162 = scmp.le.s32.totalorder 1, %s9
    %p163 = scmp.lt.s32.totalorder %s9, 3
    %p164 = pnand %p162, %p163
    %p165 = pneg %p164
    // Predicated region
    $region29: #{dilate_attention.1} parent=5 // pred_check
      _
    $region30: #{dilate_attention.1} parent=5 // pred_check_branch
      %167 = sbr.rel (%p164) target = $region32
    $region31: #{dilate_attention.1} parent=5 // pred_region
      %s168 = ssub.s32 %s9, 1
      %s169 = smul.u32 4, %s14
      %p170 = scmp.lt.s32.totalorder %s169, 7
      %s171 = scalar_select %p170, %s169, 7
      %s172 = smul.addr %s171, 2
      %s173 = smul.addr %s172, 8
      %s174 = scalar_lea.vmem %s0, %s173
      %p175 = pneg %p35
      %p176 = pneg %p32
      %s177 = smul.u32 4, %s14
      %p178 = scmp.lt.s32.totalorder %s177, 7
      %s179 = scalar_select %p178, %s177, 7
      %s180 = smul.addr %s179, 2
      %s181 = smul.addr %s180, 8
      %s182 = scalar_lea.vmem %s1, %s181
      %p183 = pneg %p61
      %p184 = pneg %p58
      %s185 = smul.u32 4, %s14
      %p186 = scmp.lt.s32.totalorder %s185, 7
      %s187 = scalar_select %p186, %s185, 7
      %s188 = smul.addr %s187, 2
      %s189 = smul.addr %s188, 8
      %s190 = scalar_lea.vmem %s2, %s189
      %p191 = pneg %p87
      %p192 = pneg %p84
      %p193 = pneg %p113
      %p194 = pneg %p110
      %s195 = smul.u32 4, %s14
      %p196 = scmp.lt.s32.totalorder %s195, 7
      %s197 = scalar_select %p196, %s195, 7
      %s198 = smul.addr %s197, 2
      %s199 = smul.addr %s198, 8
      %s200 = scalar_lea.vmem %s3, %s199
      %s201 = smul.u32 4, %s14
      %p202 = scmp.lt.s32.totalorder %s201, 7
      %s203 = scalar_select %p202, %s201, 7
      %s204 = smul.addr %s203, 2
      %s205 = smul.addr %s204, 8
      %s206 = scalar_lea.vmem %s0, %s205
      %s207 = smul.u32 4, %s14
      %s208 = smul.u32 4, %s14
      %p209 = scmp.lt.s32.totalorder %s208, 7
      %s210 = scalar_select %p209, %s208, 7
      %s211 = smul.addr %s210, 2
      %s212 = smul.addr %s211, 8
      %s213 = scalar_lea.vmem %s1, %s212
      %s214 = smul.u32 4, %s14
      %s215 = smul.u32 4, %s14
      %p216 = scmp.lt.s32.totalorder %s215, 7
      %s217 = scalar_select %p216, %s215, 7
      %s218 = smul.addr %s217, 2
      %s219 = smul.addr %s218, 8
      %s220 = scalar_lea.vmem %s2, %s219
      %s221 = smul.u32 4, %s14
      %s222 = smul.u32 4, %s14
      %p223 = scmp.lt.s32.totalorder %s222, 7
      %s224 = scalar_select %p223, %s222, 7
      %s225 = smul.addr %s224, 2
      %s226 = smul.addr %s225, 8
      %s227 = scalar_lea.vmem %s3, %s226
      %s228 = smul.u32 4, %s14
      %v229 = vld [vmem:[%s206] sm:$0xff]
      %v230 = vld [vmem:[%s206 + $0x8] sm:$0xff]
      %v231 = vld [vmem:[%s206 + $0x10] sm:$0xff]
      %v232 = vld [vmem:[%s206 + $0x18] sm:$0xff]
      %v233 = vld [vmem:[%s206 + $0x20] sm:$0xff]
      %v234 = vld [vmem:[%s206 + $0x28] sm:$0xff]
      %v235 = vld [vmem:[%s206 + $0x30] sm:$0xff]
      %v236 = vld [vmem:[%s206 + $0x38] sm:$0xff]
      %v237 = vmul.f32 %v229, 0.35355338
      %v238 = vmul.f32 %v230, 0.35355338
      %v239 = vmul.f32 %v231, 0.35355338
      %v240 = vmul.f32 %v232, 0.35355338
      %v241 = vmul.f32 %v233, 0.35355338
      %v242 = vmul.f32 %v234, 0.35355338
      %v243 = vmul.f32 %v235, 0.35355338
      %v244 = vmul.f32 %v236, 0.35355338
      %vm245 = vcmask 138240
      %246 = vst.msk [vmem:[#allocation2] sm:$0xff] %vm245, 0.0
      %247 = vst.msk [vmem:[#allocation2 + $0x18] sm:$0xff] %vm245, 0.0
      %248 = vst.msk [vmem:[#allocation2 + $0x30] sm:$0xff] %vm245, 0.0
      %249 = vst.msk [vmem:[#allocation2 + $0x48] sm:$0xff] %vm245, 0.0
      %vm250 = vcmask 277640
      %251 = vst.msk [vmem:[#allocation2 + $0x10] sm:$0xff] %vm250, 0.0
      %252 = vst.msk [vmem:[#allocation2 + $0x28] sm:$0xff] %vm250, 0.0
      %253 = vst.msk [vmem:[#allocation2 + $0x40] sm:$0xff] %vm250, 0.0
      %254 = vst.msk [vmem:[#allocation2 + $0x58] sm:$0xff] %vm250, 0.0
      %255 = vst.msk [vmem:[#allocation3] sm:$0xff] %vm245, 0.0
      %256 = vst.msk [vmem:[#allocation3 + $0x18] sm:$0xff] %vm245, 0.0
      %257 = vst.msk [vmem:[#allocation3 + $0x30] sm:$0xff] %vm245, 0.0
      %258 = vst.msk [vmem:[#allocation3 + $0x48] sm:$0xff] %vm245, 0.0
      %259 = vst.msk [vmem:[#allocation3 + $0x10] sm:$0xff] %vm250, 0.0
      %260 = vst.msk [vmem:[#allocation3 + $0x28] sm:$0xff] %vm250, 0.0
      %261 = vst.msk [vmem:[#allocation3 + $0x40] sm:$0xff] %vm250, 0.0
      %262 = vst.msk [vmem:[#allocation3 + $0x58] sm:$0xff] %vm250, 0.0
      %v263 = vld [vmem:[%s213] sm:$0xff]
      %v264 = vld [vmem:[%s213 + $0x8] sm:$0xff]
      %v265 = vld [vmem:[%s213 + $0x10] sm:$0xff]
      %v266 = vld [vmem:[%s213 + $0x18] sm:$0xff]
      %v267 = vld [vmem:[%s213 + $0x20] sm:$0xff]
      %v268 = vld [vmem:[%s213 + $0x28] sm:$0xff]
      %v269 = vld [vmem:[%s213 + $0x30] sm:$0xff]
      %v270 = vld [vmem:[%s213 + $0x38] sm:$0xff]
      %279 = vrot.lane.b32.xlu0 %v263, 17
      %v280 = vpop.permute.xlu0 %279
      %281 = vrot.lane.b32.xlu0 %v264, 17
      %v282 = vpop.permute.xlu0 %281
      %283 = vrot.lane.b32.xlu0 %v265, 17
      %v284 = vpop.permute.xlu0 %283
      %285 = vrot.lane.b32.xlu0 %v266, 17
      %v286 = vpop.permute.xlu0 %285
      %287 = vrot.lane.b32.xlu0 %v267, 17
      %v288 = vpop.permute.xlu0 %287
      %289 = vrot.lane.b32.xlu0 %v268, 17
      %v290 = vpop.permute.xlu0 %289
      %291 = vrot.lane.b32.xlu0 %v269, 17
      %v292 = vpop.permute.xlu0 %291
      %293 = vrot.lane.b32.xlu0 %v270, 17
      %v294 = vpop.permute.xlu0 %293
      %v295 = vsel %vm245, %v280, %v282
      %v296 = vsel %vm245, %v284, %v286
      %v297 = vsel %vm245, %v288, %v290
      %v298 = vsel %vm245, %v292, %v294
      %vm311 = vcmask 1047688
      %312 = vst.msk [vmem:[#allocation2] sm:$0xff] %vm311, %v280
      %313 = vst [vmem:[#allocation2 + $0x8] sm:$0xff] %v295
      %314 = vst.msk [vmem:[#allocation2 + $0x10] sm:$0xff] %vm245, %v282
      %315 = vst.msk [vmem:[#allocation2 + $0x18] sm:$0xff] %vm311, %v284
      %316 = vst [vmem:[#allocation2 + $0x20] sm:$0xff] %v296
      %317 = vst.msk [vmem:[#allocation2 + $0x28] sm:$0xff] %vm245, %v286
      %318 = vst.msk [vmem:[#allocation2 + $0x30] sm:$0xff] %vm311, %v288
      %319 = vst [vmem:[#allocation2 + $0x38] sm:$0xff] %v297
      %320 = vst.msk [vmem:[#allocation2 + $0x40] sm:$0xff] %vm245, %v290
      %321 = vst.msk [vmem:[#allocation2 + $0x48] sm:$0xff] %vm311, %v292
      %322 = vst [vmem:[#allocation2 + $0x50] sm:$0xff] %v298
      %323 = vst.msk [vmem:[#allocation2 + $0x58] sm:$0xff] %vm245, %v294
      %v324 = vld [vmem:[%s220] sm:$0xff]
      %v325 = vld [vmem:[%s220 + $0x8] sm:$0xff]
      %v326 = vld [vmem:[%s220 + $0x10] sm:$0xff]
      %v327 = vld [vmem:[%s220 + $0x18] sm:$0xff]
      %v328 = vld [vmem:[%s220 + $0x20] sm:$0xff]
      %v329 = vld [vmem:[%s220 + $0x28] sm:$0xff]
      %v330 = vld [vmem:[%s220 + $0x30] sm:$0xff]
      %v331 = vld [vmem:[%s220 + $0x38] sm:$0xff]
      %340 = vrot.lane.b32.xlu0 %v324, 17
      %v341 = vpop.permute.xlu0 %340
      %342 = vrot.lane.b32.xlu0 %v325, 17
      %v343 = vpop.permute.xlu0 %342
      %344 = vrot.lane.b32.xlu0 %v326, 17
      %v345 = vpop.permute.xlu0 %344
      %346 = vrot.lane.b32.xlu0 %v327, 17
      %v347 = vpop.permute.xlu0 %346
      %348 = vrot.lane.b32.xlu0 %v328, 17
      %v349 = vpop.permute.xlu0 %348
      %350 = vrot.lane.b32.xlu0 %v329, 17
      %v351 = vpop.permute.xlu0 %350
      %352 = vrot.lane.b32.xlu0 %v330, 17
      %v353 = vpop.permute.xlu0 %352
      %354 = vrot.lane.b32.xlu0 %v331, 17
      %v355 = vpop.permute.xlu0 %354
      %v356 = vsel %vm245, %v341, %v343
      %v357 = vsel %vm245, %v345, %v347
      %v358 = vsel %vm245, %v349, %v351
      %v359 = vsel %vm245, %v353, %v355
      %372 = vst.msk [vmem:[#allocation3] sm:$0xff] %vm311, %v341
      %373 = vst [vmem:[#allocation3 + $0x8] sm:$0xff] %v356
      %374 = vst.msk [vmem:[#allocation3 + $0x10] sm:$0xff] %vm245, %v343
      %375 = vst.msk [vmem:[#allocation3 + $0x18] sm:$0xff] %vm311, %v345
      %376 = vst [vmem:[#allocation3 + $0x20] sm:$0xff] %v357
      %377 = vst.msk [vmem:[#allocation3 + $0x28] sm:$0xff] %vm245, %v347
      %378 = vst.msk [vmem:[#allocation3 + $0x30] sm:$0xff] %vm311, %v349
      %379 = vst [vmem:[#allocation3 + $0x38] sm:$0xff] %v358
      %380 = vst.msk [vmem:[#allocation3 + $0x40] sm:$0xff] %vm245, %v351
      %381 = vst.msk [vmem:[#allocation3 + $0x48] sm:$0xff] %vm311, %v353
      %382 = vst [vmem:[#allocation3 + $0x50] sm:$0xff] %v359
      %383 = vst.msk [vmem:[#allocation3 + $0x58] sm:$0xff] %vm245, %v355
      %v384 = vlaneseq
      %v385 = vand.u32 %v384, 127
      %v386 = vadd.s32 %v385, 128
      %vm387 = vcmp.lt.s32.totalorder %v385, 0
      %v388 = vsub.s32 0, %v385
      %v389 = vsel %vm387, %v388, %v385
      %v390 = vshrl.u32 %v389, 4
      %v391 = vand.u32 %v389, 15
      %v392 = vsub.s32 0, %v391
      %v393 = vsel %vm387, %v392, %v391
      %vm394 = vcmp.lt.s32.totalorder %v386, 0
      %v395 = vsub.s32 0, %v386
      %v396 = vsel %vm394, %v395, %v386
      %v397 = vshrl.u32 %v396, 4
      %v398 = vand.u32 %v396, 15
      %v399 = vsub.s32 0, %v398
      %v400 = vsel %vm394, %v399, %v398
      %vm401 = vcmp.ne.s32.totalorder %v393, 0
      %vm402 = vcmp.ne.s32.totalorder %v400, 0
      %vm403 = vcmp.lt.s32.totalorder %v393, 0
      %vm404 = vcmp.lt.s32.totalorder %v400, 0
      %vm405 = vmand %vm403, %vm401
      %vm406 = vmand %vm404, %vm402
      %v407 = vadd.s32 %v393, 16
      %v408 = vadd.s32 %v400, 16
      %v409 = vsel %vm405, %v407, %v393
      %v410 = vsel %vm406, %v408, %v400
      %v411 = vadd.s32 %v409, 4294967295
      %v412 = vadd.s32 %v410, 4294967295
      %vm413 = vcmp.ge.s32.totalorder %v411, 0
      %vm414 = vcmp.ge.s32.totalorder %v412, 0
      %vm415 = vcmp.lt.s32.totalorder %v411, 16
      %vm416 = vcmp.lt.s32.totalorder %v412, 16
      %vm417 = vmand %vm413, %vm415
      %vm418 = vmand %vm414, %vm416
      %v419 = vsel %vm417, 1, 0
      %v420 = vsel %vm418, 1, 0
      %v421 = vcvt.s32.f32 %v419
      %v422 = vcvt.s32.f32 %v420
      %v423 = vadd.s32 %v409, 1
      %v424 = vadd.s32 %v410, 1
      %vm425 = vcmp.ge.s32.totalorder %v423, 0
      %vm426 = vcmp.ge.s32.totalorder %v424, 0
      %vm427 = vcmp.lt.s32.totalorder %v423, 16
      %vm428 = vcmp.lt.s32.totalorder %v424, 16
      %vm429 = vmand %vm425, %vm427
      %vm430 = vmand %vm426, %vm428
      %v431 = vsel %vm429, 1, 0
      %v432 = vsel %vm430, 1, 0
      %v433 = vcvt.s32.f32 %v431
      %v434 = vcvt.s32.f32 %v432
      %v435 = vld [vmem:[#allocation2] sm:$0xff]
      %v436 = vld [vmem:[#allocation2 + $0x8] sm:$0xff]
      %v437 = vld [vmem:[#allocation2 + $0x18] sm:$0xff]
      %v438 = vld [vmem:[#allocation2 + $0x20] sm:$0xff]
      %v439 = vld [vmem:[#allocation2 + $0x30] sm:$0xff]
      %v440 = vld [vmem:[#allocation2 + $0x38] sm:$0xff]
      %v441 = vld [vmem:[#allocation2 + $0x48] sm:$0xff]
      %v442 = vld [vmem:[#allocation2 + $0x50] sm:$0xff]
      %v443 = vmul.f32 %v237, %v435
      %v444 = vmul.f32 %v238, %v436
      %v445 = vmul.f32 %v239, %v437
      %v446 = vmul.f32 %v240, %v438
      %v447 = vmul.f32 %v241, %v439
      %v448 = vmul.f32 %v242, %v440
      %v449 = vmul.f32 %v243, %v441
      %v450 = vmul.f32 %v244, %v442
      %v451 = vrot.slane %v443, 4
      %v452 = vadd.f32 %v443, %v451
      %v453 = vrot.slane %v452, 2
      %v454 = vadd.f32 %v452, %v453
      %v455 = vrot.slane %v454, 1
      %v456 = vadd.f32 %v454, %v455
      %v457 = vrot.slane %v444, 4
      %v458 = vadd.f32 %v444, %v457
      %v459 = vrot.slane %v458, 2
      %v460 = vadd.f32 %v458, %v459
      %v461 = vrot.slane %v460, 1
      %v462 = vadd.f32 %v460, %v461
      %v463 = vrot.slane %v445, 4
      %v464 = vadd.f32 %v445, %v463
      %v465 = vrot.slane %v464, 2
      %v466 = vadd.f32 %v464, %v465
      %v467 = vrot.slane %v466, 1
      %v468 = vadd.f32 %v466, %v467
      %v469 = vrot.slane %v446, 4
      %v470 = vadd.f32 %v446, %v469
      %v471 = vrot.slane %v470, 2
      %v472 = vadd.f32 %v470, %v471
      %v473 = vrot.slane %v472, 1
      %v474 = vadd.f32 %v472, %v473
      %v475 = vrot.slane %v447, 4
      %v476 = vadd.f32 %v447, %v475
      %v477 = vrot.slane %v476, 2
      %v478 = vadd.f32 %v476, %v477
      %v479 = vrot.slane %v478, 1
      %v480 = vadd.f32 %v478, %v479
      %v481 = vrot.slane %v448, 4
      %v482 = vadd.f32 %v448, %v481
      %v483 = vrot.slane %v482, 2
      %v484 = vadd.f32 %v482, %v483
      %v485 = vrot.slane %v484, 1
      %v486 = vadd.f32 %v484, %v485
      %v487 = vrot.slane %v449, 4
      %v488 = vadd.f32 %v449, %v487
      %v489 = vrot.slane %v488, 2
      %v490 = vadd.f32 %v488, %v489
      %v491 = vrot.slane %v490, 1
      %v492 = vadd.f32 %v490, %v491
      %v493 = vrot.slane %v450, 4
      %v494 = vadd.f32 %v450, %v493
      %v495 = vrot.slane %v494, 2
      %v496 = vadd.f32 %v494, %v495
      %v497 = vrot.slane %v496, 1
      %v498 = vadd.f32 %v496, %v497
      %v499 = vmul.f32 %v421, %v456
      %v500 = vmul.f32 %v422, %v462
      %v501 = vmul.f32 %v421, %v468
      %v502 = vmul.f32 %v422, %v474
      %v503 = vmul.f32 %v421, %v480
      %v504 = vmul.f32 %v422, %v486
      %v505 = vmul.f32 %v421, %v492
      %v506 = vmul.f32 %v422, %v498
      %v507 = vld [vmem:[#allocation2 + $0x10] sm:$0xff]
      %v508 = vld [vmem:[#allocation2 + $0x28] sm:$0xff]
      %v509 = vld [vmem:[#allocation2 + $0x40] sm:$0xff]
      %v510 = vld [vmem:[#allocation2 + $0x58] sm:$0xff]
      %523 = vrot.lane.b32.xlu0 %v435, 127
      %v524 = vpop.permute.xlu0 %523
      %525 = vrot.lane.b32.xlu0 %v436, 127
      %v526 = vpop.permute.xlu0 %525
      %527 = vrot.lane.b32.xlu0 %v507, 127
      %v528 = vpop.permute.xlu0 %527
      %529 = vrot.lane.b32.xlu0 %v437, 127
      %v530 = vpop.permute.xlu0 %529
      %531 = vrot.lane.b32.xlu0 %v438, 127
      %v532 = vpop.permute.xlu0 %531
      %533 = vrot.lane.b32.xlu0 %v508, 127
      %v534 = vpop.permute.xlu0 %533
      %535 = vrot.lane.b32.xlu0 %v439, 127
      %v536 = vpop.permute.xlu0 %535
      %537 = vrot.lane.b32.xlu0 %v440, 127
      %v538 = vpop.permute.xlu0 %537
      %539 = vrot.lane.b32.xlu0 %v509, 127
      %v540 = vpop.permute.xlu0 %539
      %541 = vrot.lane.b32.xlu0 %v441, 127
      %v542 = vpop.permute.xlu0 %541
      %543 = vrot.lane.b32.xlu0 %v442, 127
      %v544 = vpop.permute.xlu0 %543
      %545 = vrot.lane.b32.xlu0 %v510, 127
      %v546 = vpop.permute.xlu0 %545
      %vm547 = vcmask 1039360
      %v548 = vsel %vm547, %v524, %v526
      %v549 = vsel %vm547, %v526, %v528
      %v550 = vsel %vm547, %v530, %v532
      %v551 = vsel %vm547, %v532, %v534
      %v552 = vsel %vm547, %v536, %v538
      %v553 = vsel %vm547, %v538, %v540
      %v554 = vsel %vm547, %v542, %v544
      %v555 = vsel %vm547, %v544, %v546
      %v564 = vmul.f32 %v237, %v548
      %v565 = vmul.f32 %v238, %v549
      %v566 = vmul.f32 %v239, %v550
      %v567 = vmul.f32 %v240, %v551
      %v568 = vmul.f32 %v241, %v552
      %v569 = vmul.f32 %v242, %v553
      %v570 = vmul.f32 %v243, %v554
      %v571 = vmul.f32 %v244, %v555
      %v572 = vrot.slane %v564, 4
      %v573 = vadd.f32 %v564, %v572
      %v574 = vrot.slane %v573, 2
      %v575 = vadd.f32 %v573, %v574
      %v576 = vrot.slane %v575, 1
      %v577 = vadd.f32 %v575, %v576
      %v578 = vrot.slane %v565, 4
      %v579 = vadd.f32 %v565, %v578
      %v580 = vrot.slane %v579, 2
      %v581 = vadd.f32 %v579, %v580
      %v582 = vrot.slane %v581, 1
      %v583 = vadd.f32 %v581, %v582
      %v584 = vrot.slane %v566, 4
      %v585 = vadd.f32 %v566, %v584
      %v586 = vrot.slane %v585, 2
      %v587 = vadd.f32 %v585, %v586
      %v588 = vrot.slane %v587, 1
      %v589 = vadd.f32 %v587, %v588
      %v590 = vrot.slane %v567, 4
      %v591 = vadd.f32 %v567, %v590
      %v592 = vrot.slane %v591, 2
      %v593 = vadd.f32 %v591, %v592
      %v594 = vrot.slane %v593, 1
      %v595 = vadd.f32 %v593, %v594
      %v596 = vrot.slane %v568, 4
      %v597 = vadd.f32 %v568, %v596
      %v598 = vrot.slane %v597, 2
      %v599 = vadd.f32 %v597, %v598
      %v600 = vrot.slane %v599, 1
      %v601 = vadd.f32 %v599, %v600
      %v602 = vrot.slane %v569, 4
      %v603 = vadd.f32 %v569, %v602
      %v604 = vrot.slane %v603, 2
      %v605 = vadd.f32 %v603, %v604
      %v606 = vrot.slane %v605, 1
      %v607 = vadd.f32 %v605, %v606
      %v608 = vrot.slane %v570, 4
      %v609 = vadd.f32 %v570, %v608
      %v610 = vrot.slane %v609, 2
      %v611 = vadd.f32 %v609, %v610
      %v612 = vrot.slane %v611, 1
      %v613 = vadd.f32 %v611, %v612
      %v614 = vrot.slane %v571, 4
      %v615 = vadd.f32 %v571, %v614
      %v616 = vrot.slane %v615, 2
      %v617 = vadd.f32 %v615, %v616
      %v618 = vrot.slane %v617, 1
      %v619 = vadd.f32 %v617, %v618
      %620 = vrot.lane.b32.xlu0 %v435, 126
      %v621 = vpop.permute.xlu0 %620
      %622 = vrot.lane.b32.xlu0 %v436, 126
      %v623 = vpop.permute.xlu0 %622
      %624 = vrot.lane.b32.xlu0 %v507, 126
      %v625 = vpop.permute.xlu0 %624
      %626 = vrot.lane.b32.xlu0 %v437, 126
      %v627 = vpop.permute.xlu0 %626
      %628 = vrot.lane.b32.xlu0 %v438, 126
      %v629 = vpop.permute.xlu0 %628
      %630 = vrot.lane.b32.xlu0 %v508, 126
      %v631 = vpop.permute.xlu0 %630
      %632 = vrot.lane.b32.xlu0 %v439, 126
      %v633 = vpop.permute.xlu0 %632
      %634 = vrot.lane.b32.xlu0 %v440, 126
      %v635 = vpop.permute.xlu0 %634
      %636 = vrot.lane.b32.xlu0 %v509, 126
      %v637 = vpop.permute.xlu0 %636
      %638 = vrot.lane.b32.xlu0 %v441, 126
      %v639 = vpop.permute.xlu0 %638
      %640 = vrot.lane.b32.xlu0 %v442, 126
      %v641 = vpop.permute.xlu0 %640
      %642 = vrot.lane.b32.xlu0 %v510, 126
      %v643 = vpop.permute.xlu0 %642
      %vm644 = vcmask 1031168
      %v645 = vsel %vm644, %v621, %v623
      %v646 = vsel %vm644, %v623, %v625
      %v647 = vsel %vm644, %v627, %v629
      %v648 = vsel %vm644, %v629, %v631
      %v649 = vsel %vm644, %v633, %v635
      %v650 = vsel %vm644, %v635, %v637
      %v651 = vsel %vm644, %v639, %v641
      %v652 = vsel %vm644, %v641, %v643
      %v661 = vmul.f32 %v237, %v645
      %v662 = vmul.f32 %v238, %v646
      %v663 = vmul.f32 %v239, %v647
      %v664 = vmul.f32 %v240, %v648
      %v665 = vmul.f32 %v241, %v649
      %v666 = vmul.f32 %v242, %v650
      %v667 = vmul.f32 %v243, %v651
      %v668 = vmul.f32 %v244, %v652
      %v669 = vrot.slane %v661, 4
      %v670 = vadd.f32 %v661, %v669
      %v671 = vrot.slane %v670, 2
      %v672 = vadd.f32 %v670, %v671
      %v673 = vrot.slane %v672, 1
      %v674 = vadd.f32 %v672, %v673
      %v675 = vrot.slane %v662, 4
      %v676 = vadd.f32 %v662, %v675
      %v677 = vrot.slane %v676, 2
      %v678 = vadd.f32 %v676, %v677
      %v679 = vrot.slane %v678, 1
      %v680 = vadd.f32 %v678, %v679
      %v681 = vrot.slane %v663, 4
      %v682 = vadd.f32 %v663, %v681
      %v683 = vrot.slane %v682, 2
      %v684 = vadd.f32 %v682, %v683
      %v685 = vrot.slane %v684, 1
      %v686 = vadd.f32 %v684, %v685
      %v687 = vrot.slane %v664, 4
      %v688 = vadd.f32 %v664, %v687
      %v689 = vrot.slane %v688, 2
      %v690 = vadd.f32 %v688, %v689
      %v691 = vrot.slane %v690, 1
      %v692 = vadd.f32 %v690, %v691
      %v693 = vrot.slane %v665, 4
      %v694 = vadd.f32 %v665, %v693
      %v695 = vrot.slane %v694, 2
      %v696 = vadd.f32 %v694, %v695
      %v697 = vrot.slane %v696, 1
      %v698 = vadd.f32 %v696, %v697
      %v699 = vrot.slane %v666, 4
      %v700 = vadd.f32 %v666, %v699
      %v701 = vrot.slane %v700, 2
      %v702 = vadd.f32 %v700, %v701
      %v703 = vrot.slane %v702, 1
      %v704 = vadd.f32 %v702, %v703
      %v705 = vrot.slane %v667, 4
      %v706 = vadd.f32 %v667, %v705
      %v707 = vrot.slane %v706, 2
      %v708 = vadd.f32 %v706, %v707
      %v709 = vrot.slane %v708, 1
      %v710 = vadd.f32 %v708, %v709
      %v711 = vrot.slane %v668, 4
      %v712 = vadd.f32 %v668, %v711
      %v713 = vrot.slane %v712, 2
      %v714 = vadd.f32 %v712, %v713
      %v715 = vrot.slane %v714, 1
      %v716 = vadd.f32 %v714, %v715
      %v717 = vmul.f32 %v433, %v674
      %v718 = vmul.f32 %v434, %v680
      %v719 = vmul.f32 %v433, %v686
      %v720 = vmul.f32 %v434, %v692
      %v721 = vmul.f32 %v433, %v698
      %v722 = vmul.f32 %v434, %v704
      %v723 = vmul.f32 %v433, %v710
      %v724 = vmul.f32 %v434, %v716
      %725 = vrot.lane.b32.xlu0 %v435, 112
      %v726 = vpop.permute.xlu0 %725
      %727 = vrot.lane.b32.xlu0 %v436, 112
      %v728 = vpop.permute.xlu0 %727
      %729 = vrot.lane.b32.xlu0 %v507, 112
      %v730 = vpop.permute.xlu0 %729
      %731 = vrot.lane.b32.xlu0 %v437, 112
      %v732 = vpop.permute.xlu0 %731
      %733 = vrot.lane.b32.xlu0 %v438, 112
      %v734 = vpop.permute.xlu0 %733
      %735 = vrot.lane.b32.xlu0 %v508, 112
      %v736 = vpop.permute.xlu0 %735
      %737 = vrot.lane.b32.xlu0 %v439, 112
      %v738 = vpop.permute.xlu0 %737
      %739 = vrot.lane.b32.xlu0 %v440, 112
      %v740 = vpop.permute.xlu0 %739
      %741 = vrot.lane.b32.xlu0 %v509, 112
      %v742 = vpop.permute.xlu0 %741
      %743 = vrot.lane.b32.xlu0 %v441, 112
      %v744 = vpop.permute.xlu0 %743
      %745 = vrot.lane.b32.xlu0 %v442, 112
      %v746 = vpop.permute.xlu0 %745
      %747 = vrot.lane.b32.xlu0 %v510, 112
      %v748 = vpop.permute.xlu0 %747
      %vm749 = vcmask 916480
      %v750 = vsel %vm749, %v726, %v728
      %v751 = vsel %vm749, %v728, %v730
      %v752 = vsel %vm749, %v732, %v734
      %v753 = vsel %vm749, %v734, %v736
      %v754 = vsel %vm749, %v738, %v740
      %v755 = vsel %vm749, %v740, %v742
      %v756 = vsel %vm749, %v744, %v746
      %v757 = vsel %vm749, %v746, %v748
      %v766 = vmul.f32 %v237, %v750
      %v767 = vmul.f32 %v238, %v751
      %v768 = vmul.f32 %v239, %v752
      %v769 = vmul.f32 %v240, %v753
      %v770 = vmul.f32 %v241, %v754
      %v771 = vmul.f32 %v242, %v755
      %v772 = vmul.f32 %v243, %v756
      %v773 = vmul.f32 %v244, %v757
      %v774 = vrot.slane %v766, 4
      %v775 = vadd.f32 %v766, %v774
      %v776 = vrot.slane %v775, 2
      %v777 = vadd.f32 %v775, %v776
      %v778 = vrot.slane %v777, 1
      %v779 = vadd.f32 %v777, %v778
      %v780 = vrot.slane %v767, 4
      %v781 = vadd.f32 %v767, %v780
      %v782 = vrot.slane %v781, 2
      %v783 = vadd.f32 %v781, %v782
      %v784 = vrot.slane %v783, 1
      %v785 = vadd.f32 %v783, %v784
      %v786 = vrot.slane %v768, 4
      %v787 = vadd.f32 %v768, %v786
      %v788 = vrot.slane %v787, 2
      %v789 = vadd.f32 %v787, %v788
      %v790 = vrot.slane %v789, 1
      %v791 = vadd.f32 %v789, %v790
      %v792 = vrot.slane %v769, 4
      %v793 = vadd.f32 %v769, %v792
      %v794 = vrot.slane %v793, 2
      %v795 = vadd.f32 %v793, %v794
      %v796 = vrot.slane %v795, 1
      %v797 = vadd.f32 %v795, %v796
      %v798 = vrot.slane %v770, 4
      %v799 = vadd.f32 %v770, %v798
      %v800 = vrot.slane %v799, 2
      %v801 = vadd.f32 %v799, %v800
      %v802 = vrot.slane %v801, 1
      %v803 = vadd.f32 %v801, %v802
      %v804 = vrot.slane %v771, 4
      %v805 = vadd.f32 %v771, %v804
      %v806 = vrot.slane %v805, 2
      %v807 = vadd.f32 %v805, %v806
      %v808 = vrot.slane %v807, 1
      %v809 = vadd.f32 %v807, %v808
      %v810 = vrot.slane %v772, 4
      %v811 = vadd.f32 %v772, %v810
      %v812 = vrot.slane %v811, 2
      %v813 = vadd.f32 %v811, %v812
      %v814 = vrot.slane %v813, 1
      %v815 = vadd.f32 %v813, %v814
      %v816 = vrot.slane %v773, 4
      %v817 = vadd.f32 %v773, %v816
      %v818 = vrot.slane %v817, 2
      %v819 = vadd.f32 %v817, %v818
      %v820 = vrot.slane %v819, 1
      %v821 = vadd.f32 %v819, %v820
      %v822 = vmul.f32 %v421, %v779
      %v823 = vmul.f32 %v422, %v785
      %v824 = vmul.f32 %v421, %v791
      %v825 = vmul.f32 %v422, %v797
      %v826 = vmul.f32 %v421, %v803
      %v827 = vmul.f32 %v422, %v809
      %v828 = vmul.f32 %v421, %v815
      %v829 = vmul.f32 %v422, %v821
      %830 = vrot.lane.b32.xlu0 %v435, 111
      %v831 = vpop.permute.xlu0 %830
      %832 = vrot.lane.b32.xlu0 %v436, 111
      %v833 = vpop.permute.xlu0 %832
      %834 = vrot.lane.b32.xlu0 %v507, 111
      %v835 = vpop.permute.xlu0 %834
      %836 = vrot.lane.b32.xlu0 %v437, 111
      %v837 = vpop.permute.xlu0 %836
      %838 = vrot.lane.b32.xlu0 %v438, 111
      %v839 = vpop.permute.xlu0 %838
      %840 = vrot.lane.b32.xlu0 %v508, 111
      %v841 = vpop.permute.xlu0 %840
      %842 = vrot.lane.b32.xlu0 %v439, 111
      %v843 = vpop.permute.xlu0 %842
      %844 = vrot.lane.b32.xlu0 %v440, 111
      %v845 = vpop.permute.xlu0 %844
      %846 = vrot.lane.b32.xlu0 %v509, 111
      %v847 = vpop.permute.xlu0 %846
      %848 = vrot.lane.b32.xlu0 %v441, 111
      %v849 = vpop.permute.xlu0 %848
      %850 = vrot.lane.b32.xlu0 %v442, 111
      %v851 = vpop.permute.xlu0 %850
      %852 = vrot.lane.b32.xlu0 %v510, 111
      %v853 = vpop.permute.xlu0 %852
      %vm854 = vcmask 908288
      %v855 = vsel %vm854, %v831, %v833
      %v856 = vsel %vm854, %v833, %v835
      %v857 = vsel %vm854, %v837, %v839
      %v858 = vsel %vm854, %v839, %v841
      %v859 = vsel %vm854, %v843, %v845
      %v860 = vsel %vm854, %v845, %v847
      %v861 = vsel %vm854, %v849, %v851
      %v862 = vsel %vm854, %v851, %v853
      %v871 = vmul.f32 %v237, %v855
      %v872 = vmul.f32 %v238, %v856
      %v873 = vmul.f32 %v239, %v857
      %v874 = vmul.f32 %v240, %v858
      %v875 = vmul.f32 %v241, %v859
      %v876 = vmul.f32 %v242, %v860
      %v877 = vmul.f32 %v243, %v861
      %v878 = vmul.f32 %v244, %v862
      %v879 = vrot.slane %v871, 4
      %v880 = vadd.f32 %v871, %v879
      %v881 = vrot.slane %v880, 2
      %v882 = vadd.f32 %v880, %v881
      %v883 = vrot.slane %v882, 1
      %v884 = vadd.f32 %v882, %v883
      %v885 = vrot.slane %v872, 4
      %v886 = vadd.f32 %v872, %v885
      %v887 = vrot.slane %v886, 2
      %v888 = vadd.f32 %v886, %v887
      %v889 = vrot.slane %v888, 1
      %v890 = vadd.f32 %v888, %v889
      %v891 = vrot.slane %v873, 4
      %v892 = vadd.f32 %v873, %v891
      %v893 = vrot.slane %v892, 2
      %v894 = vadd.f32 %v892, %v893
      %v895 = vrot.slane %v894, 1
      %v896 = vadd.f32 %v894, %v895
      %v897 = vrot.slane %v874, 4
      %v898 = vadd.f32 %v874, %v897
      %v899 = vrot.slane %v898, 2
      %v900 = vadd.f32 %v898, %v899
      %v901 = vrot.slane %v900, 1
      %v902 = vadd.f32 %v900, %v901
      %v903 = vrot.slane %v875, 4
      %v904 = vadd.f32 %v875, %v903
      %v905 = vrot.slane %v904, 2
      %v906 = vadd.f32 %v904, %v905
      %v907 = vrot.slane %v906, 1
      %v908 = vadd.f32 %v906, %v907
      %v909 = vrot.slane %v876, 4
      %v910 = vadd.f32 %v876, %v909
      %v911 = vrot.slane %v910, 2
      %v912 = vadd.f32 %v910, %v911
      %v913 = vrot.slane %v912, 1
      %v914 = vadd.f32 %v912, %v913
      %v915 = vrot.slane %v877, 4
      %v916 = vadd.f32 %v877, %v915
      %v917 = vrot.slane %v916, 2
      %v918 = vadd.f32 %v916, %v917
      %v919 = vrot.slane %v918, 1
      %v920 = vadd.f32 %v918, %v919
      %v921 = vrot.slane %v878, 4
      %v922 = vadd.f32 %v878, %v921
      %v923 = vrot.slane %v922, 2
      %v924 = vadd.f32 %v922, %v923
      %v925 = vrot.slane %v924, 1
      %v926 = vadd.f32 %v924, %v925
      %927 = vrot.lane.b32.xlu0 %v435, 110
      %v928 = vpop.permute.xlu0 %927
      %929 = vrot.lane.b32.xlu0 %v436, 110
      %v930 = vpop.permute.xlu0 %929
      %931 = vrot.lane.b32.xlu0 %v507, 110
      %v932 = vpop.permute.xlu0 %931
      %933 = vrot.lane.b32.xlu0 %v437, 110
      %v934 = vpop.permute.xlu0 %933
      %935 = vrot.lane.b32.xlu0 %v438, 110
      %v936 = vpop.permute.xlu0 %935
      %937 = vrot.lane.b32.xlu0 %v508, 110
      %v938 = vpop.permute.xlu0 %937
      %939 = vrot.lane.b32.xlu0 %v439, 110
      %v940 = vpop.permute.xlu0 %939
      %941 = vrot.lane.b32.xlu0 %v440, 110
      %v942 = vpop.permute.xlu0 %941
      %943 = vrot.lane.b32.xlu0 %v509, 110
      %v944 = vpop.permute.xlu0 %943
      %945 = vrot.lane.b32.xlu0 %v441, 110
      %v946 = vpop.permute.xlu0 %945
      %947 = vrot.lane.b32.xlu0 %v442, 110
      %v948 = vpop.permute.xlu0 %947
      %949 = vrot.lane.b32.xlu0 %v510, 110
      %v950 = vpop.permute.xlu0 %949
      %vm951 = vcmask 900096
      %v952 = vsel %vm951, %v928, %v930
      %v953 = vsel %vm951, %v930, %v932
      %v954 = vsel %vm951, %v934, %v936
      %v955 = vsel %vm951, %v936, %v938
      %v956 = vsel %vm951, %v940, %v942
      %v957 = vsel %vm951, %v942, %v944
      %v958 = vsel %vm951, %v946, %v948
      %v959 = vsel %vm951, %v948, %v950
      %v968 = vmul.f32 %v237, %v952
      %v969 = vmul.f32 %v238, %v953
      %v970 = vmul.f32 %v239, %v954
      %v971 = vmul.f32 %v240, %v955
      %v972 = vmul.f32 %v241, %v956
      %v973 = vmul.f32 %v242, %v957
      %v974 = vmul.f32 %v243, %v958
      %v975 = vmul.f32 %v244, %v959
      %v976 = vrot.slane %v968, 4
      %v977 = vadd.f32 %v968, %v976
      %v978 = vrot.slane %v977, 2
      %v979 = vadd.f32 %v977, %v978
      %v980 = vrot.slane %v979, 1
      %v981 = vadd.f32 %v979, %v980
      %v982 = vrot.slane %v969, 4
      %v983 = vadd.f32 %v969, %v982
      %v984 = vrot.slane %v983, 2
      %v985 = vadd.f32 %v983, %v984
      %v986 = vrot.slane %v985, 1
      %v987 = vadd.f32 %v985, %v986
      %v988 = vrot.slane %v970, 4
      %v989 = vadd.f32 %v970, %v988
      %v990 = vrot.slane %v989, 2
      %v991 = vadd.f32 %v989, %v990
      %v992 = vrot.slane %v991, 1
      %v993 = vadd.f32 %v991, %v992
      %v994 = vrot.slane %v971, 4
      %v995 = vadd.f32 %v971, %v994
      %v996 = vrot.slane %v995, 2
      %v997 = vadd.f32 %v995, %v996
      %v998 = vrot.slane %v997, 1
      %v999 = vadd.f32 %v997, %v998
      %v1000 = vrot.slane %v972, 4
      %v1001 = vadd.f32 %v972, %v1000
      %v1002 = vrot.slane %v1001, 2
      %v1003 = vadd.f32 %v1001, %v1002
      %v1004 = vrot.slane %v1003, 1
      %v1005 = vadd.f32 %v1003, %v1004
      %v1006 = vrot.slane %v973, 4
      %v1007 = vadd.f32 %v973, %v1006
      %v1008 = vrot.slane %v1007, 2
      %v1009 = vadd.f32 %v1007, %v1008
      %v1010 = vrot.slane %v1009, 1
      %v1011 = vadd.f32 %v1009, %v1010
      %v1012 = vrot.slane %v974, 4
      %v1013 = vadd.f32 %v974, %v1012
      %v1014 = vrot.slane %v1013, 2
      %v1015 = vadd.f32 %v1013, %v1014
      %v1016 = vrot.slane %v1015, 1
      %v1017 = vadd.f32 %v1015, %v1016
      %v1018 = vrot.slane %v975, 4
      %v1019 = vadd.f32 %v975, %v1018
      %v1020 = vrot.slane %v1019, 2
      %v1021 = vadd.f32 %v1019, %v1020
      %v1022 = vrot.slane %v1021, 1
      %v1023 = vadd.f32 %v1021, %v1022
      %v1024 = vmul.f32 %v433, %v981
      %v1025 = vmul.f32 %v434, %v987
      %v1026 = vmul.f32 %v433, %v993
      %v1027 = vmul.f32 %v434, %v999
      %v1028 = vmul.f32 %v433, %v1005
      %v1029 = vmul.f32 %v434, %v1011
      %v1030 = vmul.f32 %v433, %v1017
      %v1031 = vmul.f32 %v434, %v1023
      %1032 = vrot.lane.b32.xlu0 %v435, 96
      %v1033 = vpop.permute.xlu0 %1032
      %1034 = vrot.lane.b32.xlu0 %v436, 96
      %v1035 = vpop.permute.xlu0 %1034
      %1036 = vrot.lane.b32.xlu0 %v507, 96
      %v1037 = vpop.permute.xlu0 %1036
      %1038 = vrot.lane.b32.xlu0 %v437, 96
      %v1039 = vpop.permute.xlu0 %1038
      %1040 = vrot.lane.b32.xlu0 %v438, 96
      %v1041 = vpop.permute.xlu0 %1040
      %1042 = vrot.lane.b32.xlu0 %v508, 96
      %v1043 = vpop.permute.xlu0 %1042
      %1044 = vrot.lane.b32.xlu0 %v439, 96
      %v1045 = vpop.permute.xlu0 %1044
      %1046 = vrot.lane.b32.xlu0 %v440, 96
      %v1047 = vpop.permute.xlu0 %1046
      %1048 = vrot.lane.b32.xlu0 %v509, 96
      %v1049 = vpop.permute.xlu0 %1048
      %1050 = vrot.lane.b32.xlu0 %v441, 96
      %v1051 = vpop.permute.xlu0 %1050
      %1052 = vrot.lane.b32.xlu0 %v442, 96
      %v1053 = vpop.permute.xlu0 %1052
      %1054 = vrot.lane.b32.xlu0 %v510, 96
      %v1055 = vpop.permute.xlu0 %1054
      %vm1056 = vcmask 785408
      %v1057 = vsel %vm1056, %v1033, %v1035
      %v1058 = vsel %vm1056, %v1035, %v1037
      %v1059 = vsel %vm1056, %v1039, %v1041
      %v1060 = vsel %vm1056, %v1041, %v1043
      %v1061 = vsel %vm1056, %v1045, %v1047
      %v1062 = vsel %vm1056, %v1047, %v1049
      %v1063 = vsel %vm1056, %v1051, %v1053
      %v1064 = vsel %vm1056, %v1053, %v1055
      %v1073 = vmul.f32 %v237, %v1057
      %v1074 = vmul.f32 %v238, %v1058
      %v1075 = vmul.f32 %v239, %v1059
      %v1076 = vmul.f32 %v240, %v1060
      %v1077 = vmul.f32 %v241, %v1061
      %v1078 = vmul.f32 %v242, %v1062
      %v1079 = vmul.f32 %v243, %v1063
      %v1080 = vmul.f32 %v244, %v1064
      %v1081 = vrot.slane %v1073, 4
      %v1082 = vadd.f32 %v1073, %v1081
      %v1083 = vrot.slane %v1082, 2
      %v1084 = vadd.f32 %v1082, %v1083
      %v1085 = vrot.slane %v1084, 1
      %v1086 = vadd.f32 %v1084, %v1085
      %v1087 = vrot.slane %v1074, 4
      %v1088 = vadd.f32 %v1074, %v1087
      %v1089 = vrot.slane %v1088, 2
      %v1090 = vadd.f32 %v1088, %v1089
      %v1091 = vrot.slane %v1090, 1
      %v1092 = vadd.f32 %v1090, %v1091
      %v1093 = vrot.slane %v1075, 4
      %v1094 = vadd.f32 %v1075, %v1093
      %v1095 = vrot.slane %v1094, 2
      %v1096 = vadd.f32 %v1094, %v1095
      %v1097 = vrot.slane %v1096, 1
      %v1098 = vadd.f32 %v1096, %v1097
      %v1099 = vrot.slane %v1076, 4
      %v1100 = vadd.f32 %v1076, %v1099
      %v1101 = vrot.slane %v1100, 2
      %v1102 = vadd.f32 %v1100, %v1101
      %v1103 = vrot.slane %v1102, 1
      %v1104 = vadd.f32 %v1102, %v1103
      %v1105 = vrot.slane %v1077, 4
      %v1106 = vadd.f32 %v1077, %v1105
      %v1107 = vrot.slane %v1106, 2
      %v1108 = vadd.f32 %v1106, %v1107
      %v1109 = vrot.slane %v1108, 1
      %v1110 = vadd.f32 %v1108, %v1109
      %v1111 = vrot.slane %v1078, 4
      %v1112 = vadd.f32 %v1078, %v1111
      %v1113 = vrot.slane %v1112, 2
      %v1114 = vadd.f32 %v1112, %v1113
      %v1115 = vrot.slane %v1114, 1
      %v1116 = vadd.f32 %v1114, %v1115
      %v1117 = vrot.slane %v1079, 4
      %v1118 = vadd.f32 %v1079, %v1117
      %v1119 = vrot.slane %v1118, 2
      %v1120 = vadd.f32 %v1118, %v1119
      %v1121 = vrot.slane %v1120, 1
      %v1122 = vadd.f32 %v1120, %v1121
      %v1123 = vrot.slane %v1080, 4
      %v1124 = vadd.f32 %v1080, %v1123
      %v1125 = vrot.slane %v1124, 2
      %v1126 = vadd.f32 %v1124, %v1125
      %v1127 = vrot.slane %v1126, 1
      %v1128 = vadd.f32 %v1126, %v1127
      %v1129 = vmul.f32 %v421, %v1086
      %v1130 = vmul.f32 %v422, %v1092
      %v1131 = vmul.f32 %v421, %v1098
      %v1132 = vmul.f32 %v422, %v1104
      %v1133 = vmul.f32 %v421, %v1110
      %v1134 = vmul.f32 %v422, %v1116
      %v1135 = vmul.f32 %v421, %v1122
      %v1136 = vmul.f32 %v422, %v1128
      %1137 = vrot.lane.b32.xlu0 %v435, 95
      %v1138 = vpop.permute.xlu0 %1137
      %1139 = vrot.lane.b32.xlu0 %v436, 95
      %v1140 = vpop.permute.xlu0 %1139
      %1141 = vrot.lane.b32.xlu0 %v507, 95
      %v1142 = vpop.permute.xlu0 %1141
      %1143 = vrot.lane.b32.xlu0 %v437, 95
      %v1144 = vpop.permute.xlu0 %1143
      %1145 = vrot.lane.b32.xlu0 %v438, 95
      %v1146 = vpop.permute.xlu0 %1145
      %1147 = vrot.lane.b32.xlu0 %v508, 95
      %v1148 = vpop.permute.xlu0 %1147
      %1149 = vrot.lane.b32.xlu0 %v439, 95
      %v1150 = vpop.permute.xlu0 %1149
      %1151 = vrot.lane.b32.xlu0 %v440, 95
      %v1152 = vpop.permute.xlu0 %1151
      %1153 = vrot.lane.b32.xlu0 %v509, 95
      %v1154 = vpop.permute.xlu0 %1153
      %1155 = vrot.lane.b32.xlu0 %v441, 95
      %v1156 = vpop.permute.xlu0 %1155
      %1157 = vrot.lane.b32.xlu0 %v442, 95
      %v1158 = vpop.permute.xlu0 %1157
      %1159 = vrot.lane.b32.xlu0 %v510, 95
      %v1160 = vpop.permute.xlu0 %1159
      %vm1161 = vcmask 777216
      %v1162 = vsel %vm1161, %v1138, %v1140
      %v1163 = vsel %vm1161, %v1140, %v1142
      %v1164 = vsel %vm1161, %v1144, %v1146
      %v1165 = vsel %vm1161, %v1146, %v1148
      %v1166 = vsel %vm1161, %v1150, %v1152
      %v1167 = vsel %vm1161, %v1152, %v1154
      %v1168 = vsel %vm1161, %v1156, %v1158
      %v1169 = vsel %vm1161, %v1158, %v1160
      %v1178 = vmul.f32 %v237, %v1162
      %v1179 = vmul.f32 %v238, %v1163
      %v1180 = vmul.f32 %v239, %v1164
      %v1181 = vmul.f32 %v240, %v1165
      %v1182 = vmul.f32 %v241, %v1166
      %v1183 = vmul.f32 %v242, %v1167
      %v1184 = vmul.f32 %v243, %v1168
      %v1185 = vmul.f32 %v244, %v1169
      %v1186 = vrot.slane %v1178, 4
      %v1187 = vadd.f32 %v1178, %v1186
      %v1188 = vrot.slane %v1187, 2
      %v1189 = vadd.f32 %v1187, %v1188
      %v1190 = vrot.slane %v1189, 1
      %v1191 = vadd.f32 %v1189, %v1190
      %v1192 = vrot.slane %v1179, 4
      %v1193 = vadd.f32 %v1179, %v1192
      %v1194 = vrot.slane %v1193, 2
      %v1195 = vadd.f32 %v1193, %v1194
      %v1196 = vrot.slane %v1195, 1
      %v1197 = vadd.f32 %v1195, %v1196
      %v1198 = vrot.slane %v1180, 4
      %v1199 = vadd.f32 %v1180, %v1198
      %v1200 = vrot.slane %v1199, 2
      %v1201 = vadd.f32 %v1199, %v1200
      %v1202 = vrot.slane %v1201, 1
      %v1203 = vadd.f32 %v1201, %v1202
      %v1204 = vrot.slane %v1181, 4
      %v1205 = vadd.f32 %v1181, %v1204
      %v1206 = vrot.slane %v1205, 2
      %v1207 = vadd.f32 %v1205, %v1206
      %v1208 = vrot.slane %v1207, 1
      %v1209 = vadd.f32 %v1207, %v1208
      %v1210 = vrot.slane %v1182, 4
      %v1211 = vadd.f32 %v1182, %v1210
      %v1212 = vrot.slane %v1211, 2
      %v1213 = vadd.f32 %v1211, %v1212
      %v1214 = vrot.slane %v1213, 1
      %v1215 = vadd.f32 %v1213, %v1214
      %v1216 = vrot.slane %v1183, 4
      %v1217 = vadd.f32 %v1183, %v1216
      %v1218 = vrot.slane %v1217, 2
      %v1219 = vadd.f32 %v1217, %v1218
      %v1220 = vrot.slane %v1219, 1
      %v1221 = vadd.f32 %v1219, %v1220
      %v1222 = vrot.slane %v1184, 4
      %v1223 = vadd.f32 %v1184, %v1222
      %v1224 = vrot.slane %v1223, 2
      %v1225 = vadd.f32 %v1223, %v1224
      %v1226 = vrot.slane %v1225, 1
      %v1227 = vadd.f32 %v1225, %v1226
      %v1228 = vrot.slane %v1185, 4
      %v1229 = vadd.f32 %v1185, %v1228
      %v1230 = vrot.slane %v1229, 2
      %v1231 = vadd.f32 %v1229, %v1230
      %v1232 = vrot.slane %v1231, 1
      %v1233 = vadd.f32 %v1231, %v1232
      %1234 = vrot.lane.b32.xlu0 %v435, 94
      %v1235 = vpop.permute.xlu0 %1234
      %1236 = vrot.lane.b32.xlu0 %v436, 94
      %v1237 = vpop.permute.xlu0 %1236
      %1238 = vrot.lane.b32.xlu0 %v507, 94
      %v1239 = vpop.permute.xlu0 %1238
      %1240 = vrot.lane.b32.xlu0 %v437, 94
      %v1241 = vpop.permute.xlu0 %1240
      %1242 = vrot.lane.b32.xlu0 %v438, 94
      %v1243 = vpop.permute.xlu0 %1242
      %1244 = vrot.lane.b32.xlu0 %v508, 94
      %v1245 = vpop.permute.xlu0 %1244
      %1246 = vrot.lane.b32.xlu0 %v439, 94
      %v1247 = vpop.permute.xlu0 %1246
      %1248 = vrot.lane.b32.xlu0 %v440, 94
      %v1249 = vpop.permute.xlu0 %1248
      %1250 = vrot.lane.b32.xlu0 %v509, 94
      %v1251 = vpop.permute.xlu0 %1250
      %1252 = vrot.lane.b32.xlu0 %v441, 94
      %v1253 = vpop.permute.xlu0 %1252
      %1254 = vrot.lane.b32.xlu0 %v442, 94
      %v1255 = vpop.permute.xlu0 %1254
      %1256 = vrot.lane.b32.xlu0 %v510, 94
      %v1257 = vpop.permute.xlu0 %1256
      %vm1258 = vcmask 769024
      %v1259 = vsel %vm1258, %v1235, %v1237
      %v1260 = vsel %vm1258, %v1237, %v1239
      %v1261 = vsel %vm1258, %v1241, %v1243
      %v1262 = vsel %vm1258, %v1243, %v1245
      %v1263 = vsel %vm1258, %v1247, %v1249
      %v1264 = vsel %vm1258, %v1249, %v1251
      %v1265 = vsel %vm1258, %v1253, %v1255
      %v1266 = vsel %vm1258, %v1255, %v1257
      %v1275 = vmul.f32 %v237, %v1259
      %v1276 = vmul.f32 %v238, %v1260
      %v1277 = vmul.f32 %v239, %v1261
      %v1278 = vmul.f32 %v240, %v1262
      %v1279 = vmul.f32 %v241, %v1263
      %v1280 = vmul.f32 %v242, %v1264
      %v1281 = vmul.f32 %v243, %v1265
      %v1282 = vmul.f32 %v244, %v1266
      %v1283 = vrot.slane %v1275, 4
      %v1284 = vadd.f32 %v1275, %v1283
      %v1285 = vrot.slane %v1284, 2
      %v1286 = vadd.f32 %v1284, %v1285
      %v1287 = vrot.slane %v1286, 1
      %v1288 = vadd.f32 %v1286, %v1287
      %v1289 = vrot.slane %v1276, 4
      %v1290 = vadd.f32 %v1276, %v1289
      %v1291 = vrot.slane %v1290, 2
      %v1292 = vadd.f32 %v1290, %v1291
      %v1293 = vrot.slane %v1292, 1
      %v1294 = vadd.f32 %v1292, %v1293
      %v1295 = vrot.slane %v1277, 4
      %v1296 = vadd.f32 %v1277, %v1295
      %v1297 = vrot.slane %v1296, 2
      %v1298 = vadd.f32 %v1296, %v1297
      %v1299 = vrot.slane %v1298, 1
      %v1300 = vadd.f32 %v1298, %v1299
      %v1301 = vrot.slane %v1278, 4
      %v1302 = vadd.f32 %v1278, %v1301
      %v1303 = vrot.slane %v1302, 2
      %v1304 = vadd.f32 %v1302, %v1303
      %v1305 = vrot.slane %v1304, 1
      %v1306 = vadd.f32 %v1304, %v1305
      %v1307 = vrot.slane %v1279, 4
      %v1308 = vadd.f32 %v1279, %v1307
      %v1309 = vrot.slane %v1308, 2
      %v1310 = vadd.f32 %v1308, %v1309
      %v1311 = vrot.slane %v1310, 1
      %v1312 = vadd.f32 %v1310, %v1311
      %v1313 = vrot.slane %v1280, 4
      %v1314 = vadd.f32 %v1280, %v1313
      %v1315 = vrot.slane %v1314, 2
      %v1316 = vadd.f32 %v1314, %v1315
      %v1317 = vrot.slane %v1316, 1
      %v1318 = vadd.f32 %v1316, %v1317
      %v1319 = vrot.slane %v1281, 4
      %v1320 = vadd.f32 %v1281, %v1319
      %v1321 = vrot.slane %v1320, 2
      %v1322 = vadd.f32 %v1320, %v1321
      %v1323 = vrot.slane %v1322, 1
      %v1324 = vadd.f32 %v1322, %v1323
      %v1325 = vrot.slane %v1282, 4
      %v1326 = vadd.f32 %v1282, %v1325
      %v1327 = vrot.slane %v1326, 2
      %v1328 = vadd.f32 %v1326, %v1327
      %v1329 = vrot.slane %v1328, 1
      %v1330 = vadd.f32 %v1328, %v1329
      %v1331 = vmul.f32 %v433, %v1288
      %v1332 = vmul.f32 %v434, %v1294
      %v1333 = vmul.f32 %v433, %v1300
      %v1334 = vmul.f32 %v434, %v1306
      %v1335 = vmul.f32 %v433, %v1312
      %v1336 = vmul.f32 %v434, %v1318
      %v1337 = vmul.f32 %v433, %v1324
      %v1338 = vmul.f32 %v434, %v1330
      %v1339 = vmax.f32 %v499, %v577
      %v1340 = vmax.f32 %v500, %v583
      %v1341 = vmax.f32 %v501, %v589
      %v1342 = vmax.f32 %v502, %v595
      %v1343 = vmax.f32 %v503, %v601
      %v1344 = vmax.f32 %v504, %v607
      %v1345 = vmax.f32 %v505, %v613
      %v1346 = vmax.f32 %v506, %v619
      %v1347 = vmax.f32 %v1339, %v717
      %v1348 = vmax.f32 %v1340, %v718
      %v1349 = vmax.f32 %v1341, %v719
      %v1350 = vmax.f32 %v1342, %v720
      %v1351 = vmax.f32 %v1343, %v721
      %v1352 = vmax.f32 %v1344, %v722
      %v1353 = vmax.f32 %v1345, %v723
      %v1354 = vmax.f32 %v1346, %v724
      %v1355 = vmax.f32 %v1347, %v822
      %v1356 = vmax.f32 %v1348, %v823
      %v1357 = vmax.f32 %v1349, %v824
      %v1358 = vmax.f32 %v1350, %v825
      %v1359 = vmax.f32 %v1351, %v826
      %v1360 = vmax.f32 %v1352, %v827
      %v1361 = vmax.f32 %v1353, %v828
      %v1362 = vmax.f32 %v1354, %v829
      %v1363 = vmax.f32 %v1355, %v884
      %v1364 = vmax.f32 %v1356, %v890
      %v1365 = vmax.f32 %v1357, %v896
      %v1366 = vmax.f32 %v1358, %v902
      %v1367 = vmax.f32 %v1359, %v908
      %v1368 = vmax.f32 %v1360, %v914
      %v1369 = vmax.f32 %v1361, %v920
      %v1370 = vmax.f32 %v1362, %v926
      %v1371 = vmax.f32 %v1363, %v1024
      %v1372 = vmax.f32 %v1364, %v1025
      %v1373 = vmax.f32 %v1365, %v1026
      %v1374 = vmax.f32 %v1366, %v1027
      %v1375 = vmax.f32 %v1367, %v1028
      %v1376 = vmax.f32 %v1368, %v1029
      %v1377 = vmax.f32 %v1369, %v1030
      %v1378 = vmax.f32 %v1370, %v1031
      %v1379 = vmax.f32 %v1371, %v1129
      %v1380 = vmax.f32 %v1372, %v1130
      %v1381 = vmax.f32 %v1373, %v1131
      %v1382 = vmax.f32 %v1374, %v1132
      %v1383 = vmax.f32 %v1375, %v1133
      %v1384 = vmax.f32 %v1376, %v1134
      %v1385 = vmax.f32 %v1377, %v1135
      %v1386 = vmax.f32 %v1378, %v1136
      %v1387 = vmax.f32 %v1379, %v1191
      %v1388 = vmax.f32 %v1380, %v1197
      %v1389 = vmax.f32 %v1381, %v1203
      %v1390 = vmax.f32 %v1382, %v1209
      %v1391 = vmax.f32 %v1383, %v1215
      %v1392 = vmax.f32 %v1384, %v1221
      %v1393 = vmax.f32 %v1385, %v1227
      %v1394 = vmax.f32 %v1386, %v1233
      %v1395 = vmax.f32 %v1387, %v1331
      %v1396 = vmax.f32 %v1388, %v1332
      %v1397 = vmax.f32 %v1389, %v1333
      %v1398 = vmax.f32 %v1390, %v1334
      %v1399 = vmax.f32 %v1391, %v1335
      %v1400 = vmax.f32 %v1392, %v1336
      %v1401 = vmax.f32 %v1393, %v1337
      %v1402 = vmax.f32 %v1394, %v1338
      %v1403 = vsub.f32 %v499, %v1395
      %v1404 = vsub.f32 %v500, %v1396
      %v1405 = vsub.f32 %v501, %v1397
      %v1406 = vsub.f32 %v502, %v1398
      %v1407 = vsub.f32 %v503, %v1399
      %v1408 = vsub.f32 %v504, %v1400
      %v1409 = vsub.f32 %v505, %v1401
      %v1410 = vsub.f32 %v506, %v1402
      %v1411 = vmul.f32 %v1403, 1.442695
      %v1412 = vpow.pop %v1411
      %v1413 = vmul.f32 %v1404, 1.442695
      %v1414 = vpow.pop %v1413
      %v1415 = vmul.f32 %v1405, 1.442695
      %v1416 = vpow.pop %v1415
      %v1417 = vmul.f32 %v1406, 1.442695
      %v1418 = vpow.pop %v1417
      %v1419 = vmul.f32 %v1407, 1.442695
      %v1420 = vpow.pop %v1419
      %v1421 = vmul.f32 %v1408, 1.442695
      %v1422 = vpow.pop %v1421
      %v1423 = vmul.f32 %v1409, 1.442695
      %v1424 = vpow.pop %v1423
      %v1425 = vmul.f32 %v1410, 1.442695
      %v1426 = vpow.pop %v1425
      %v1427 = vadd.f32 %v1412, 0.0
      %v1428 = vadd.f32 %v1414, 0.0
      %v1429 = vadd.f32 %v1416, 0.0
      %v1430 = vadd.f32 %v1418, 0.0
      %v1431 = vadd.f32 %v1420, 0.0
      %v1432 = vadd.f32 %v1422, 0.0
      %v1433 = vadd.f32 %v1424, 0.0
      %v1434 = vadd.f32 %v1426, 0.0
      %v1435 = vmul.f32 %v1412, %v421
      %v1436 = vmul.f32 %v1414, %v422
      %v1437 = vmul.f32 %v1416, %v421
      %v1438 = vmul.f32 %v1418, %v422
      %v1439 = vmul.f32 %v1420, %v421
      %v1440 = vmul.f32 %v1422, %v422
      %v1441 = vmul.f32 %v1424, %v421
      %v1442 = vmul.f32 %v1426, %v422
      %v1443 = vld [vmem:[#allocation3] sm:$0xff]
      %v1444 = vld [vmem:[#allocation3 + $0x8] sm:$0xff]
      %v1445 = vld [vmem:[#allocation3 + $0x18] sm:$0xff]
      %v1446 = vld [vmem:[#allocation3 + $0x20] sm:$0xff]
      %v1447 = vld [vmem:[#allocation3 + $0x30] sm:$0xff]
      %v1448 = vld [vmem:[#allocation3 + $0x38] sm:$0xff]
      %v1449 = vld [vmem:[#allocation3 + $0x48] sm:$0xff]
      %v1450 = vld [vmem:[#allocation3 + $0x50] sm:$0xff]
      %v1451 = vmul.f32 %v1435, %v1443
      %v1452 = vmul.f32 %v1436, %v1444
      %v1453 = vmul.f32 %v1437, %v1445
      %v1454 = vmul.f32 %v1438, %v1446
      %v1455 = vmul.f32 %v1439, %v1447
      %v1456 = vmul.f32 %v1440, %v1448
      %v1457 = vmul.f32 %v1441, %v1449
      %v1458 = vmul.f32 %v1442, %v1450
      %v1459 = vadd.f32 %v1451, 0.0
      %v1460 = vadd.f32 %v1452, 0.0
      %v1461 = vadd.f32 %v1453, 0.0
      %v1462 = vadd.f32 %v1454, 0.0
      %v1463 = vadd.f32 %v1455, 0.0
      %v1464 = vadd.f32 %v1456, 0.0
      %v1465 = vadd.f32 %v1457, 0.0
      %v1466 = vadd.f32 %v1458, 0.0
      %v1467 = vsub.f32 %v577, %v1395
      %v1468 = vsub.f32 %v583, %v1396
      %v1469 = vsub.f32 %v589, %v1397
      %v1470 = vsub.f32 %v595, %v1398
      %v1471 = vsub.f32 %v601, %v1399
      %v1472 = vsub.f32 %v607, %v1400
      %v1473 = vsub.f32 %v613, %v1401
      %v1474 = vsub.f32 %v619, %v1402
      %v1475 = vmul.f32 %v1467, 1.442695
      %v1476 = vpow.pop %v1475
      %v1477 = vmul.f32 %v1468, 1.442695
      %v1478 = vpow.pop %v1477
      %v1479 = vmul.f32 %v1469, 1.442695
      %v1480 = vpow.pop %v1479
      %v1481 = vmul.f32 %v1470, 1.442695
      %v1482 = vpow.pop %v1481
      %v1483 = vmul.f32 %v1471, 1.442695
      %v1484 = vpow.pop %v1483
      %v1485 = vmul.f32 %v1472, 1.442695
      %v1486 = vpow.pop %v1485
      %v1487 = vmul.f32 %v1473, 1.442695
      %v1488 = vpow.pop %v1487
      %v1489 = vmul.f32 %v1474, 1.442695
      %v1490 = vpow.pop %v1489
      %v1491 = vadd.f32 %v1427, %v1476
      %v1492 = vadd.f32 %v1428, %v1478
      %v1493 = vadd.f32 %v1429, %v1480
      %v1494 = vadd.f32 %v1430, %v1482
      %v1495 = vadd.f32 %v1431, %v1484
      %v1496 = vadd.f32 %v1432, %v1486
      %v1497 = vadd.f32 %v1433, %v1488
      %v1498 = vadd.f32 %v1434, %v1490
      %v1499 = vld [vmem:[#allocation3 + $0x10] sm:$0xff]
      %v1500 = vld [vmem:[#allocation3 + $0x28] sm:$0xff]
      %v1501 = vld [vmem:[#allocation3 + $0x40] sm:$0xff]
      %v1502 = vld [vmem:[#allocation3 + $0x58] sm:$0xff]
      %1515 = vrot.lane.b32.xlu0 %v1443, 127
      %v1516 = vpop.permute.xlu0 %1515
      %1517 = vrot.lane.b32.xlu0 %v1444, 127
      %v1518 = vpop.permute.xlu0 %1517
      %1519 = vrot.lane.b32.xlu0 %v1499, 127
      %v1520 = vpop.permute.xlu0 %1519
      %1521 = vrot.lane.b32.xlu0 %v1445, 127
      %v1522 = vpop.permute.xlu0 %1521
      %1523 = vrot.lane.b32.xlu0 %v1446, 127
      %v1524 = vpop.permute.xlu0 %1523
      %1525 = vrot.lane.b32.xlu0 %v1500, 127
      %v1526 = vpop.permute.xlu0 %1525
      %1527 = vrot.lane.b32.xlu0 %v1447, 127
      %v1528 = vpop.permute.xlu0 %1527
      %1529 = vrot.lane.b32.xlu0 %v1448, 127
      %v1530 = vpop.permute.xlu0 %1529
      %1531 = vrot.lane.b32.xlu0 %v1501, 127
      %v1532 = vpop.permute.xlu0 %1531
      %1533 = vrot.lane.b32.xlu0 %v1449, 127
      %v1534 = vpop.permute.xlu0 %1533
      %1535 = vrot.lane.b32.xlu0 %v1450, 127
      %v1536 = vpop.permute.xlu0 %1535
      %1537 = vrot.lane.b32.xlu0 %v1502, 127
      %v1538 = vpop.permute.xlu0 %1537
      %v1539 = vsel %vm547, %v1516, %v1518
      %v1540 = vsel %vm547, %v1518, %v1520
      %v1541 = vsel %vm547, %v1522, %v1524
      %v1542 = vsel %vm547, %v1524, %v1526
      %v1543 = vsel %vm547, %v1528, %v1530
      %v1544 = vsel %vm547, %v1530, %v1532
      %v1545 = vsel %vm547, %v1534, %v1536
      %v1546 = vsel %vm547, %v1536, %v1538
      %v1555 = vmul.f32 %v1476, %v1539
      %v1556 = vmul.f32 %v1478, %v1540
      %v1557 = vmul.f32 %v1480, %v1541
      %v1558 = vmul.f32 %v1482, %v1542
      %v1559 = vmul.f32 %v1484, %v1543
      %v1560 = vmul.f32 %v1486, %v1544
      %v1561 = vmul.f32 %v1488, %v1545
      %v1562 = vmul.f32 %v1490, %v1546
      %v1563 = vadd.f32 %v1459, %v1555
      %v1564 = vadd.f32 %v1460, %v1556
      %v1565 = vadd.f32 %v1461, %v1557
      %v1566 = vadd.f32 %v1462, %v1558
      %v1567 = vadd.f32 %v1463, %v1559
      %v1568 = vadd.f32 %v1464, %v1560
      %v1569 = vadd.f32 %v1465, %v1561
      %v1570 = vadd.f32 %v1466, %v1562
      %v1571 = vsub.f32 %v717, %v1395
      %v1572 = vsub.f32 %v718, %v1396
      %v1573 = vsub.f32 %v719, %v1397
      %v1574 = vsub.f32 %v720, %v1398
      %v1575 = vsub.f32 %v721, %v1399
      %v1576 = vsub.f32 %v722, %v1400
      %v1577 = vsub.f32 %v723, %v1401
      %v1578 = vsub.f32 %v724, %v1402
      %v1579 = vmul.f32 %v1571, 1.442695
      %v1580 = vpow.pop %v1579
      %v1581 = vmul.f32 %v1572, 1.442695
      %v1582 = vpow.pop %v1581
      %v1583 = vmul.f32 %v1573, 1.442695
      %v1584 = vpow.pop %v1583
      %v1585 = vmul.f32 %v1574, 1.442695
      %v1586 = vpow.pop %v1585
      %v1587 = vmul.f32 %v1575, 1.442695
      %v1588 = vpow.pop %v1587
      %v1589 = vmul.f32 %v1576, 1.442695
      %v1590 = vpow.pop %v1589
      %v1591 = vmul.f32 %v1577, 1.442695
      %v1592 = vpow.pop %v1591
      %v1593 = vmul.f32 %v1578, 1.442695
      %v1594 = vpow.pop %v1593
      %v1595 = vadd.f32 %v1491, %v1580
      %v1596 = vadd.f32 %v1492, %v1582
      %v1597 = vadd.f32 %v1493, %v1584
      %v1598 = vadd.f32 %v1494, %v1586
      %v1599 = vadd.f32 %v1495, %v1588
      %v1600 = vadd.f32 %v1496, %v1590
      %v1601 = vadd.f32 %v1497, %v1592
      %v1602 = vadd.f32 %v1498, %v1594
      %v1603 = vmul.f32 %v1580, %v433
      %v1604 = vmul.f32 %v1582, %v434
      %v1605 = vmul.f32 %v1584, %v433
      %v1606 = vmul.f32 %v1586, %v434
      %v1607 = vmul.f32 %v1588, %v433
      %v1608 = vmul.f32 %v1590, %v434
      %v1609 = vmul.f32 %v1592, %v433
      %v1610 = vmul.f32 %v1594, %v434
      %1611 = vrot.lane.b32.xlu0 %v1443, 126
      %v1612 = vpop.permute.xlu0 %1611
      %1613 = vrot.lane.b32.xlu0 %v1444, 126
      %v1614 = vpop.permute.xlu0 %1613
      %1615 = vrot.lane.b32.xlu0 %v1499, 126
      %v1616 = vpop.permute.xlu0 %1615
      %1617 = vrot.lane.b32.xlu0 %v1445, 126
      %v1618 = vpop.permute.xlu0 %1617
      %1619 = vrot.lane.b32.xlu0 %v1446, 126
      %v1620 = vpop.permute.xlu0 %1619
      %1621 = vrot.lane.b32.xlu0 %v1500, 126
      %v1622 = vpop.permute.xlu0 %1621
      %1623 = vrot.lane.b32.xlu0 %v1447, 126
      %v1624 = vpop.permute.xlu0 %1623
      %1625 = vrot.lane.b32.xlu0 %v1448, 126
      %v1626 = vpop.permute.xlu0 %1625
      %1627 = vrot.lane.b32.xlu0 %v1501, 126
      %v1628 = vpop.permute.xlu0 %1627
      %1629 = vrot.lane.b32.xlu0 %v1449, 126
      %v1630 = vpop.permute.xlu0 %1629
      %1631 = vrot.lane.b32.xlu0 %v1450, 126
      %v1632 = vpop.permute.xlu0 %1631
      %1633 = vrot.lane.b32.xlu0 %v1502, 126
      %v1634 = vpop.permute.xlu0 %1633
      %v1635 = vsel %vm644, %v1612, %v1614
      %v1636 = vsel %vm644, %v1614, %v1616
      %v1637 = vsel %vm644, %v1618, %v1620
      %v1638 = vsel %vm644, %v1620, %v1622
      %v1639 = vsel %vm644, %v1624, %v1626
      %v1640 = vsel %vm644, %v1626, %v1628
      %v1641 = vsel %vm644, %v1630, %v1632
      %v1642 = vsel %vm644, %v1632, %v1634
      %v1651 = vmul.f32 %v1603, %v1635
      %v1652 = vmul.f32 %v1604, %v1636
      %v1653 = vmul.f32 %v1605, %v1637
      %v1654 = vmul.f32 %v1606, %v1638
      %v1655 = vmul.f32 %v1607, %v1639
      %v1656 = vmul.f32 %v1608, %v1640
      %v1657 = vmul.f32 %v1609, %v1641
      %v1658 = vmul.f32 %v1610, %v1642
      %v1659 = vadd.f32 %v1563, %v1651
      %v1660 = vadd.f32 %v1564, %v1652
      %v1661 = vadd.f32 %v1565, %v1653
      %v1662 = vadd.f32 %v1566, %v1654
      %v1663 = vadd.f32 %v1567, %v1655
      %v1664 = vadd.f32 %v1568, %v1656
      %v1665 = vadd.f32 %v1569, %v1657
      %v1666 = vadd.f32 %v1570, %v1658
      %v1667 = vsub.f32 %v822, %v1395
      %v1668 = vsub.f32 %v823, %v1396
      %v1669 = vsub.f32 %v824, %v1397
      %v1670 = vsub.f32 %v825, %v1398
      %v1671 = vsub.f32 %v826, %v1399
      %v1672 = vsub.f32 %v827, %v1400
      %v1673 = vsub.f32 %v828, %v1401
      %v1674 = vsub.f32 %v829, %v1402
      %v1675 = vmul.f32 %v1667, 1.442695
      %v1676 = vpow.pop %v1675
      %v1677 = vmul.f32 %v1668, 1.442695
      %v1678 = vpow.pop %v1677
      %v1679 = vmul.f32 %v1669, 1.442695
      %v1680 = vpow.pop %v1679
      %v1681 = vmul.f32 %v1670, 1.442695
      %v1682 = vpow.pop %v1681
      %v1683 = vmul.f32 %v1671, 1.442695
      %v1684 = vpow.pop %v1683
      %v1685 = vmul.f32 %v1672, 1.442695
      %v1686 = vpow.pop %v1685
      %v1687 = vmul.f32 %v1673, 1.442695
      %v1688 = vpow.pop %v1687
      %v1689 = vmul.f32 %v1674, 1.442695
      %v1690 = vpow.pop %v1689
      %v1691 = vadd.f32 %v1595, %v1676
      %v1692 = vadd.f32 %v1596, %v1678
      %v1693 = vadd.f32 %v1597, %v1680
      %v1694 = vadd.f32 %v1598, %v1682
      %v1695 = vadd.f32 %v1599, %v1684
      %v1696 = vadd.f32 %v1600, %v1686
      %v1697 = vadd.f32 %v1601, %v1688
      %v1698 = vadd.f32 %v1602, %v1690
      %v1699 = vmul.f32 %v1676, %v421
      %v1700 = vmul.f32 %v1678, %v422
      %v1701 = vmul.f32 %v1680, %v421
      %v1702 = vmul.f32 %v1682, %v422
      %v1703 = vmul.f32 %v1684, %v421
      %v1704 = vmul.f32 %v1686, %v422
      %v1705 = vmul.f32 %v1688, %v421
      %v1706 = vmul.f32 %v1690, %v422
      %1707 = vrot.lane.b32.xlu0 %v1443, 112
      %v1708 = vpop.permute.xlu0 %1707
      %1709 = vrot.lane.b32.xlu0 %v1444, 112
      %v1710 = vpop.permute.xlu0 %1709
      %1711 = vrot.lane.b32.xlu0 %v1499, 112
      %v1712 = vpop.permute.xlu0 %1711
      %1713 = vrot.lane.b32.xlu0 %v1445, 112
      %v1714 = vpop.permute.xlu0 %1713
      %1715 = vrot.lane.b32.xlu0 %v1446, 112
      %v1716 = vpop.permute.xlu0 %1715
      %1717 = vrot.lane.b32.xlu0 %v1500, 112
      %v1718 = vpop.permute.xlu0 %1717
      %1719 = vrot.lane.b32.xlu0 %v1447, 112
      %v1720 = vpop.permute.xlu0 %1719
      %1721 = vrot.lane.b32.xlu0 %v1448, 112
      %v1722 = vpop.permute.xlu0 %1721
      %1723 = vrot.lane.b32.xlu0 %v1501, 112
      %v1724 = vpop.permute.xlu0 %1723
      %1725 = vrot.lane.b32.xlu0 %v1449, 112
      %v1726 = vpop.permute.xlu0 %1725
      %1727 = vrot.lane.b32.xlu0 %v1450, 112
      %v1728 = vpop.permute.xlu0 %1727
      %1729 = vrot.lane.b32.xlu0 %v1502, 112
      %v1730 = vpop.permute.xlu0 %1729
      %v1731 = vsel %vm749, %v1708, %v1710
      %v1732 = vsel %vm749, %v1710, %v1712
      %v1733 = vsel %vm749, %v1714, %v1716
      %v1734 = vsel %vm749, %v1716, %v1718
      %v1735 = vsel %vm749, %v1720, %v1722
      %v1736 = vsel %vm749, %v1722, %v1724
      %v1737 = vsel %vm749, %v1726, %v1728
      %v1738 = vsel %vm749, %v1728, %v1730
      %v1747 = vmul.f32 %v1699, %v1731
      %v1748 = vmul.f32 %v1700, %v1732
      %v1749 = vmul.f32 %v1701, %v1733
      %v1750 = vmul.f32 %v1702, %v1734
      %v1751 = vmul.f32 %v1703, %v1735
      %v1752 = vmul.f32 %v1704, %v1736
      %v1753 = vmul.f32 %v1705, %v1737
      %v1754 = vmul.f32 %v1706, %v1738
      %v1755 = vadd.f32 %v1659, %v1747
      %v1756 = vadd.f32 %v1660, %v1748
      %v1757 = vadd.f32 %v1661, %v1749
      %v1758 = vadd.f32 %v1662, %v1750
      %v1759 = vadd.f32 %v1663, %v1751
      %v1760 = vadd.f32 %v1664, %v1752
      %v1761 = vadd.f32 %v1665, %v1753
      %v1762 = vadd.f32 %v1666, %v1754
      %v1763 = vsub.f32 %v884, %v1395
      %v1764 = vsub.f32 %v890, %v1396
      %v1765 = vsub.f32 %v896, %v1397
      %v1766 = vsub.f32 %v902, %v1398
      %v1767 = vsub.f32 %v908, %v1399
      %v1768 = vsub.f32 %v914, %v1400
      %v1769 = vsub.f32 %v920, %v1401
      %v1770 = vsub.f32 %v926, %v1402
      %v1771 = vmul.f32 %v1763, 1.442695
      %v1772 = vpow.pop %v1771
      %v1773 = vmul.f32 %v1764, 1.442695
      %v1774 = vpow.pop %v1773
      %v1775 = vmul.f32 %v1765, 1.442695
      %v1776 = vpow.pop %v1775
      %v1777 = vmul.f32 %v1766, 1.442695
      %v1778 = vpow.pop %v1777
      %v1779 = vmul.f32 %v1767, 1.442695
      %v1780 = vpow.pop %v1779
      %v1781 = vmul.f32 %v1768, 1.442695
      %v1782 = vpow.pop %v1781
      %v1783 = vmul.f32 %v1769, 1.442695
      %v1784 = vpow.pop %v1783
      %v1785 = vmul.f32 %v1770, 1.442695
      %v1786 = vpow.pop %v1785
      %v1787 = vadd.f32 %v1691, %v1772
      %v1788 = vadd.f32 %v1692, %v1774
      %v1789 = vadd.f32 %v1693, %v1776
      %v1790 = vadd.f32 %v1694, %v1778
      %v1791 = vadd.f32 %v1695, %v1780
      %v1792 = vadd.f32 %v1696, %v1782
      %v1793 = vadd.f32 %v1697, %v1784
      %v1794 = vadd.f32 %v1698, %v1786
      %1795 = vrot.lane.b32.xlu0 %v1443, 111
      %v1796 = vpop.permute.xlu0 %1795
      %1797 = vrot.lane.b32.xlu0 %v1444, 111
      %v1798 = vpop.permute.xlu0 %1797
      %1799 = vrot.lane.b32.xlu0 %v1499, 111
      %v1800 = vpop.permute.xlu0 %1799
      %1801 = vrot.lane.b32.xlu0 %v1445, 111
      %v1802 = vpop.permute.xlu0 %1801
      %1803 = vrot.lane.b32.xlu0 %v1446, 111
      %v1804 = vpop.permute.xlu0 %1803
      %1805 = vrot.lane.b32.xlu0 %v1500, 111
      %v1806 = vpop.permute.xlu0 %1805
      %1807 = vrot.lane.b32.xlu0 %v1447, 111
      %v1808 = vpop.permute.xlu0 %1807
      %1809 = vrot.lane.b32.xlu0 %v1448, 111
      %v1810 = vpop.permute.xlu0 %1809
      %1811 = vrot.lane.b32.xlu0 %v1501, 111
      %v1812 = vpop.permute.xlu0 %1811
      %1813 = vrot.lane.b32.xlu0 %v1449, 111
      %v1814 = vpop.permute.xlu0 %1813
      %1815 = vrot.lane.b32.xlu0 %v1450, 111
      %v1816 = vpop.permute.xlu0 %1815
      %1817 = vrot.lane.b32.xlu0 %v1502, 111
      %v1818 = vpop.permute.xlu0 %1817
      %v1819 = vsel %vm854, %v1796, %v1798
      %v1820 = vsel %vm854, %v1798, %v1800
      %v1821 = vsel %vm854, %v1802, %v1804
      %v1822 = vsel %vm854, %v1804, %v1806
      %v1823 = vsel %vm854, %v1808, %v1810
      %v1824 = vsel %vm854, %v1810, %v1812
      %v1825 = vsel %vm854, %v1814, %v1816
      %v1826 = vsel %vm854, %v1816, %v1818
      %v1835 = vmul.f32 %v1772, %v1819
      %v1836 = vmul.f32 %v1774, %v1820
      %v1837 = vmul.f32 %v1776, %v1821
      %v1838 = vmul.f32 %v1778, %v1822
      %v1839 = vmul.f32 %v1780, %v1823
      %v1840 = vmul.f32 %v1782, %v1824
      %v1841 = vmul.f32 %v1784, %v1825
      %v1842 = vmul.f32 %v1786, %v1826
      %v1843 = vadd.f32 %v1755, %v1835
      %v1844 = vadd.f32 %v1756, %v1836
      %v1845 = vadd.f32 %v1757, %v1837
      %v1846 = vadd.f32 %v1758, %v1838
      %v1847 = vadd.f32 %v1759, %v1839
      %v1848 = vadd.f32 %v1760, %v1840
      %v1849 = vadd.f32 %v1761, %v1841
      %v1850 = vadd.f32 %v1762, %v1842
      %v1851 = vsub.f32 %v1024, %v1395
      %v1852 = vsub.f32 %v1025, %v1396
      %v1853 = vsub.f32 %v1026, %v1397
      %v1854 = vsub.f32 %v1027, %v1398
      %v1855 = vsub.f32 %v1028, %v1399
      %v1856 = vsub.f32 %v1029, %v1400
      %v1857 = vsub.f32 %v1030, %v1401
      %v1858 = vsub.f32 %v1031, %v1402
      %v1859 = vmul.f32 %v1851, 1.442695
      %v1860 = vpow.pop %v1859
      %v1861 = vmul.f32 %v1852, 1.442695
      %v1862 = vpow.pop %v1861
      %v1863 = vmul.f32 %v1853, 1.442695
      %v1864 = vpow.pop %v1863
      %v1865 = vmul.f32 %v1854, 1.442695
      %v1866 = vpow.pop %v1865
      %v1867 = vmul.f32 %v1855, 1.442695
      %v1868 = vpow.pop %v1867
      %v1869 = vmul.f32 %v1856, 1.442695
      %v1870 = vpow.pop %v1869
      %v1871 = vmul.f32 %v1857, 1.442695
      %v1872 = vpow.pop %v1871
      %v1873 = vmul.f32 %v1858, 1.442695
      %v1874 = vpow.pop %v1873
      %v1875 = vadd.f32 %v1787, %v1860
      %v1876 = vadd.f32 %v1788, %v1862
      %v1877 = vadd.f32 %v1789, %v1864
      %v1878 = vadd.f32 %v1790, %v1866
      %v1879 = vadd.f32 %v1791, %v1868
      %v1880 = vadd.f32 %v1792, %v1870
      %v1881 = vadd.f32 %v1793, %v1872
      %v1882 = vadd.f32 %v1794, %v1874
      %v1883 = vmul.f32 %v1860, %v433
      %v1884 = vmul.f32 %v1862, %v434
      %v1885 = vmul.f32 %v1864, %v433
      %v1886 = vmul.f32 %v1866, %v434
      %v1887 = vmul.f32 %v1868, %v433
      %v1888 = vmul.f32 %v1870, %v434
      %v1889 = vmul.f32 %v1872, %v433
      %v1890 = vmul.f32 %v1874, %v434
      %1891 = vrot.lane.b32.xlu0 %v1443, 110
      %v1892 = vpop.permute.xlu0 %1891
      %1893 = vrot.lane.b32.xlu0 %v1444, 110
      %v1894 = vpop.permute.xlu0 %1893
      %1895 = vrot.lane.b32.xlu0 %v1499, 110
      %v1896 = vpop.permute.xlu0 %1895
      %1897 = vrot.lane.b32.xlu0 %v1445, 110
      %v1898 = vpop.permute.xlu0 %1897
      %1899 = vrot.lane.b32.xlu0 %v1446, 110
      %v1900 = vpop.permute.xlu0 %1899
      %1901 = vrot.lane.b32.xlu0 %v1500, 110
      %v1902 = vpop.permute.xlu0 %1901
      %1903 = vrot.lane.b32.xlu0 %v1447, 110
      %v1904 = vpop.permute.xlu0 %1903
      %1905 = vrot.lane.b32.xlu0 %v1448, 110
      %v1906 = vpop.permute.xlu0 %1905
      %1907 = vrot.lane.b32.xlu0 %v1501, 110
      %v1908 = vpop.permute.xlu0 %1907
      %1909 = vrot.lane.b32.xlu0 %v1449, 110
      %v1910 = vpop.permute.xlu0 %1909
      %1911 = vrot.lane.b32.xlu0 %v1450, 110
      %v1912 = vpop.permute.xlu0 %1911
      %1913 = vrot.lane.b32.xlu0 %v1502, 110
      %v1914 = vpop.permute.xlu0 %1913
      %v1915 = vsel %vm951, %v1892, %v1894
      %v1916 = vsel %vm951, %v1894, %v1896
      %v1917 = vsel %vm951, %v1898, %v1900
      %v1918 = vsel %vm951, %v1900, %v1902
      %v1919 = vsel %vm951, %v1904, %v1906
      %v1920 = vsel %vm951, %v1906, %v1908
      %v1921 = vsel %vm951, %v1910, %v1912
      %v1922 = vsel %vm951, %v1912, %v1914
      %v1931 = vmul.f32 %v1883, %v1915
      %v1932 = vmul.f32 %v1884, %v1916
      %v1933 = vmul.f32 %v1885, %v1917
      %v1934 = vmul.f32 %v1886, %v1918
      %v1935 = vmul.f32 %v1887, %v1919
      %v1936 = vmul.f32 %v1888, %v1920
      %v1937 = vmul.f32 %v1889, %v1921
      %v1938 = vmul.f32 %v1890, %v1922
      %v1939 = vadd.f32 %v1843, %v1931
      %v1940 = vadd.f32 %v1844, %v1932
      %v1941 = vadd.f32 %v1845, %v1933
      %v1942 = vadd.f32 %v1846, %v1934
      %v1943 = vadd.f32 %v1847, %v1935
      %v1944 = vadd.f32 %v1848, %v1936
      %v1945 = vadd.f32 %v1849, %v1937
      %v1946 = vadd.f32 %v1850, %v1938
      %v1947 = vsub.f32 %v1129, %v1395
      %v1948 = vsub.f32 %v1130, %v1396
      %v1949 = vsub.f32 %v1131, %v1397
      %v1950 = vsub.f32 %v1132, %v1398
      %v1951 = vsub.f32 %v1133, %v1399
      %v1952 = vsub.f32 %v1134, %v1400
      %v1953 = vsub.f32 %v1135, %v1401
      %v1954 = vsub.f32 %v1136, %v1402
      %v1955 = vmul.f32 %v1947, 1.442695
      %v1956 = vpow.pop %v1955
      %v1957 = vmul.f32 %v1948, 1.442695
      %v1958 = vpow.pop %v1957
      %v1959 = vmul.f32 %v1949, 1.442695
      %v1960 = vpow.pop %v1959
      %v1961 = vmul.f32 %v1950, 1.442695
      %v1962 = vpow.pop %v1961
      %v1963 = vmul.f32 %v1951, 1.442695
      %v1964 = vpow.pop %v1963
      %v1965 = vmul.f32 %v1952, 1.442695
      %v1966 = vpow.pop %v1965
      %v1967 = vmul.f32 %v1953, 1.442695
      %v1968 = vpow.pop %v1967
      %v1969 = vmul.f32 %v1954, 1.442695
      %v1970 = vpow.pop %v1969
      %v1971 = vadd.f32 %v1875, %v1956
      %v1972 = vadd.f32 %v1876, %v1958
      %v1973 = vadd.f32 %v1877, %v1960
      %v1974 = vadd.f32 %v1878, %v1962
      %v1975 = vadd.f32 %v1879, %v1964
      %v1976 = vadd.f32 %v1880, %v1966
      %v1977 = vadd.f32 %v1881, %v1968
      %v1978 = vadd.f32 %v1882, %v1970
      %v1979 = vmul.f32 %v1956, %v421
      %v1980 = vmul.f32 %v1958, %v422
      %v1981 = vmul.f32 %v1960, %v421
      %v1982 = vmul.f32 %v1962, %v422
      %v1983 = vmul.f32 %v1964, %v421
      %v1984 = vmul.f32 %v1966, %v422
      %v1985 = vmul.f32 %v1968, %v421
      %v1986 = vmul.f32 %v1970, %v422
      %1987 = vrot.lane.b32.xlu0 %v1443, 96
      %v1988 = vpop.permute.xlu0 %1987
      %1989 = vrot.lane.b32.xlu0 %v1444, 96
      %v1990 = vpop.permute.xlu0 %1989
      %1991 = vrot.lane.b32.xlu0 %v1499, 96
      %v1992 = vpop.permute.xlu0 %1991
      %1993 = vrot.lane.b32.xlu0 %v1445, 96
      %v1994 = vpop.permute.xlu0 %1993
      %1995 = vrot.lane.b32.xlu0 %v1446, 96
      %v1996 = vpop.permute.xlu0 %1995
      %1997 = vrot.lane.b32.xlu0 %v1500, 96
      %v1998 = vpop.permute.xlu0 %1997
      %1999 = vrot.lane.b32.xlu0 %v1447, 96
      %v2000 = vpop.permute.xlu0 %1999
      %2001 = vrot.lane.b32.xlu0 %v1448, 96
      %v2002 = vpop.permute.xlu0 %2001
      %2003 = vrot.lane.b32.xlu0 %v1501, 96
      %v2004 = vpop.permute.xlu0 %2003
      %2005 = vrot.lane.b32.xlu0 %v1449, 96
      %v2006 = vpop.permute.xlu0 %2005
      %2007 = vrot.lane.b32.xlu0 %v1450, 96
      %v2008 = vpop.permute.xlu0 %2007
      %2009 = vrot.lane.b32.xlu0 %v1502, 96
      %v2010 = vpop.permute.xlu0 %2009
      %v2011 = vsel %vm1056, %v1988, %v1990
      %v2012 = vsel %vm1056, %v1990, %v1992
      %v2013 = vsel %vm1056, %v1994, %v1996
      %v2014 = vsel %vm1056, %v1996, %v1998
      %v2015 = vsel %vm1056, %v2000, %v2002
      %v2016 = vsel %vm1056, %v2002, %v2004
      %v2017 = vsel %vm1056, %v2006, %v2008
      %v2018 = vsel %vm1056, %v2008, %v2010
      %v2027 = vmul.f32 %v1979, %v2011
      %v2028 = vmul.f32 %v1980, %v2012
      %v2029 = vmul.f32 %v1981, %v2013
      %v2030 = vmul.f32 %v1982, %v2014
      %v2031 = vmul.f32 %v1983, %v2015
      %v2032 = vmul.f32 %v1984, %v2016
      %v2033 = vmul.f32 %v1985, %v2017
      %v2034 = vmul.f32 %v1986, %v2018
      %v2035 = vadd.f32 %v1939, %v2027
      %v2036 = vadd.f32 %v1940, %v2028
      %v2037 = vadd.f32 %v1941, %v2029
      %v2038 = vadd.f32 %v1942, %v2030
      %v2039 = vadd.f32 %v1943, %v2031
      %v2040 = vadd.f32 %v1944, %v2032
      %v2041 = vadd.f32 %v1945, %v2033
      %v2042 = vadd.f32 %v1946, %v2034
      %v2043 = vsub.f32 %v1191, %v1395
      %v2044 = vsub.f32 %v1197, %v1396
      %v2045 = vsub.f32 %v1203, %v1397
      %v2046 = vsub.f32 %v1209, %v1398
      %v2047 = vsub.f32 %v1215, %v1399
      %v2048 = vsub.f32 %v1221, %v1400
      %v2049 = vsub.f32 %v1227, %v1401
      %v2050 = vsub.f32 %v1233, %v1402
      %v2051 = vmul.f32 %v2043, 1.442695
      %v2052 = vpow.pop %v2051
      %v2053 = vmul.f32 %v2044, 1.442695
      %v2054 = vpow.pop %v2053
      %v2055 = vmul.f32 %v2045, 1.442695
      %v2056 = vpow.pop %v2055
      %v2057 = vmul.f32 %v2046, 1.442695
      %v2058 = vpow.pop %v2057
      %v2059 = vmul.f32 %v2047, 1.442695
      %v2060 = vpow.pop %v2059
      %v2061 = vmul.f32 %v2048, 1.442695
      %v2062 = vpow.pop %v2061
      %v2063 = vmul.f32 %v2049, 1.442695
      %v2064 = vpow.pop %v2063
      %v2065 = vmul.f32 %v2050, 1.442695
      %v2066 = vpow.pop %v2065
      %v2067 = vadd.f32 %v1971, %v2052
      %v2068 = vadd.f32 %v1972, %v2054
      %v2069 = vadd.f32 %v1973, %v2056
      %v2070 = vadd.f32 %v1974, %v2058
      %v2071 = vadd.f32 %v1975, %v2060
      %v2072 = vadd.f32 %v1976, %v2062
      %v2073 = vadd.f32 %v1977, %v2064
      %v2074 = vadd.f32 %v1978, %v2066
      %2075 = vrot.lane.b32.xlu0 %v1443, 95
      %v2076 = vpop.permute.xlu0 %2075
      %2077 = vrot.lane.b32.xlu0 %v1444, 95
      %v2078 = vpop.permute.xlu0 %2077
      %2079 = vrot.lane.b32.xlu0 %v1499, 95
      %v2080 = vpop.permute.xlu0 %2079
      %2081 = vrot.lane.b32.xlu0 %v1445, 95
      %v2082 = vpop.permute.xlu0 %2081
      %2083 = vrot.lane.b32.xlu0 %v1446, 95
      %v2084 = vpop.permute.xlu0 %2083
      %2085 = vrot.lane.b32.xlu0 %v1500, 95
      %v2086 = vpop.permute.xlu0 %2085
      %2087 = vrot.lane.b32.xlu0 %v1447, 95
      %v2088 = vpop.permute.xlu0 %2087
      %2089 = vrot.lane.b32.xlu0 %v1448, 95
      %v2090 = vpop.permute.xlu0 %2089
      %2091 = vrot.lane.b32.xlu0 %v1501, 95
      %v2092 = vpop.permute.xlu0 %2091
      %2093 = vrot.lane.b32.xlu0 %v1449, 95
      %v2094 = vpop.permute.xlu0 %2093
      %2095 = vrot.lane.b32.xlu0 %v1450, 95
      %v2096 = vpop.permute.xlu0 %2095
      %2097 = vrot.lane.b32.xlu0 %v1502, 95
      %v2098 = vpop.permute.xlu0 %2097
      %v2099 = vsel %vm1161, %v2076, %v2078
      %v2100 = vsel %vm1161, %v2078, %v2080
      %v2101 = vsel %vm1161, %v2082, %v2084
      %v2102 = vsel %vm1161, %v2084, %v2086
      %v2103 = vsel %vm1161, %v2088, %v2090
      %v2104 = vsel %vm1161, %v2090, %v2092
      %v2105 = vsel %vm1161, %v2094, %v2096
      %v2106 = vsel %vm1161, %v2096, %v2098
      %v2115 = vmul.f32 %v2052, %v2099
      %v2116 = vmul.f32 %v2054, %v2100
      %v2117 = vmul.f32 %v2056, %v2101
      %v2118 = vmul.f32 %v2058, %v2102
      %v2119 = vmul.f32 %v2060, %v2103
      %v2120 = vmul.f32 %v2062, %v2104
      %v2121 = vmul.f32 %v2064, %v2105
      %v2122 = vmul.f32 %v2066, %v2106
      %v2123 = vadd.f32 %v2035, %v2115
      %v2124 = vadd.f32 %v2036, %v2116
      %v2125 = vadd.f32 %v2037, %v2117
      %v2126 = vadd.f32 %v2038, %v2118
      %v2127 = vadd.f32 %v2039, %v2119
      %v2128 = vadd.f32 %v2040, %v2120
      %v2129 = vadd.f32 %v2041, %v2121
      %v2130 = vadd.f32 %v2042, %v2122
      %v2131 = vsub.f32 %v1331, %v1395
      %v2132 = vsub.f32 %v1332, %v1396
      %v2133 = vsub.f32 %v1333, %v1397
      %v2134 = vsub.f32 %v1334, %v1398
      %v2135 = vsub.f32 %v1335, %v1399
      %v2136 = vsub.f32 %v1336, %v1400
      %v2137 = vsub.f32 %v1337, %v1401
      %v2138 = vsub.f32 %v1338, %v1402
      %v2139 = vmul.f32 %v2131, 1.442695
      %v2140 = vpow.pop %v2139
      %v2141 = vmul.f32 %v2132, 1.442695
      %v2142 = vpow.pop %v2141
      %v2143 = vmul.f32 %v2133, 1.442695
      %v2144 = vpow.pop %v2143
      %v2145 = vmul.f32 %v2134, 1.442695
      %v2146 = vpow.pop %v2145
      %v2147 = vmul.f32 %v2135, 1.442695
      %v2148 = vpow.pop %v2147
      %v2149 = vmul.f32 %v2136, 1.442695
      %v2150 = vpow.pop %v2149
      %v2151 = vmul.f32 %v2137, 1.442695
      %v2152 = vpow.pop %v2151
      %v2153 = vmul.f32 %v2138, 1.442695
      %v2154 = vpow.pop %v2153
      %v2155 = vadd.f32 %v2067, %v2140
      %v2156 = vadd.f32 %v2068, %v2142
      %v2157 = vadd.f32 %v2069, %v2144
      %v2158 = vadd.f32 %v2070, %v2146
      %v2159 = vadd.f32 %v2071, %v2148
      %v2160 = vadd.f32 %v2072, %v2150
      %v2161 = vadd.f32 %v2073, %v2152
      %v2162 = vadd.f32 %v2074, %v2154
      %v2163 = vmul.f32 %v2140, %v433
      %v2164 = vmul.f32 %v2142, %v434
      %v2165 = vmul.f32 %v2144, %v433
      %v2166 = vmul.f32 %v2146, %v434
      %v2167 = vmul.f32 %v2148, %v433
      %v2168 = vmul.f32 %v2150, %v434
      %v2169 = vmul.f32 %v2152, %v433
      %v2170 = vmul.f32 %v2154, %v434
      %2171 = vrot.lane.b32.xlu0 %v1443, 94
      %v2172 = vpop.permute.xlu0 %2171
      %2173 = vrot.lane.b32.xlu0 %v1444, 94
      %v2174 = vpop.permute.xlu0 %2173
      %2175 = vrot.lane.b32.xlu0 %v1499, 94
      %v2176 = vpop.permute.xlu0 %2175
      %2177 = vrot.lane.b32.xlu0 %v1445, 94
      %v2178 = vpop.permute.xlu0 %2177
      %2179 = vrot.lane.b32.xlu0 %v1446, 94
      %v2180 = vpop.permute.xlu0 %2179
      %2181 = vrot.lane.b32.xlu0 %v1500, 94
      %v2182 = vpop.permute.xlu0 %2181
      %2183 = vrot.lane.b32.xlu0 %v1447, 94
      %v2184 = vpop.permute.xlu0 %2183
      %2185 = vrot.lane.b32.xlu0 %v1448, 94
      %v2186 = vpop.permute.xlu0 %2185
      %2187 = vrot.lane.b32.xlu0 %v1501, 94
      %v2188 = vpop.permute.xlu0 %2187
      %2189 = vrot.lane.b32.xlu0 %v1449, 94
      %v2190 = vpop.permute.xlu0 %2189
      %2191 = vrot.lane.b32.xlu0 %v1450, 94
      %v2192 = vpop.permute.xlu0 %2191
      %2193 = vrot.lane.b32.xlu0 %v1502, 94
      %v2194 = vpop.permute.xlu0 %2193
      %v2195 = vsel %vm1258, %v2172, %v2174
      %v2196 = vsel %vm1258, %v2174, %v2176
      %v2197 = vsel %vm1258, %v2178, %v2180
      %v2198 = vsel %vm1258, %v2180, %v2182
      %v2199 = vsel %vm1258, %v2184, %v2186
      %v2200 = vsel %vm1258, %v2186, %v2188
      %v2201 = vsel %vm1258, %v2190, %v2192
      %v2202 = vsel %vm1258, %v2192, %v2194
      %v2211 = vmul.f32 %v2163, %v2195
      %v2212 = vmul.f32 %v2164, %v2196
      %v2213 = vmul.f32 %v2165, %v2197
      %v2214 = vmul.f32 %v2166, %v2198
      %v2215 = vmul.f32 %v2167, %v2199
      %v2216 = vmul.f32 %v2168, %v2200
      %v2217 = vmul.f32 %v2169, %v2201
      %v2218 = vmul.f32 %v2170, %v2202
      %v2219 = vadd.f32 %v2123, %v2211
      %v2220 = vadd.f32 %v2124, %v2212
      %v2221 = vadd.f32 %v2125, %v2213
      %v2222 = vadd.f32 %v2126, %v2214
      %v2223 = vadd.f32 %v2127, %v2215
      %v2224 = vadd.f32 %v2128, %v2216
      %v2225 = vadd.f32 %v2129, %v2217
      %v2226 = vadd.f32 %v2130, %v2218
      %v2227 = vrcp.pop %v2155
      %v2228 = vrcp.pop %v2156
      %v2229 = vrcp.pop %v2157
      %v2230 = vrcp.pop %v2158
      %v2231 = vrcp.pop %v2159
      %v2232 = vrcp.pop %v2160
      %v2233 = vrcp.pop %v2161
      %v2234 = vrcp.pop %v2162
      %v2235 = vmul.f32 %v2219, %v2227
      %v2236 = vmul.f32 %v2220, %v2228
      %v2237 = vmul.f32 %v2221, %v2229
      %v2238 = vmul.f32 %v2222, %v2230
      %v2239 = vmul.f32 %v2223, %v2231
      %v2240 = vmul.f32 %v2224, %v2232
      %v2241 = vmul.f32 %v2225, %v2233
      %v2242 = vmul.f32 %v2226, %v2234
      %2243 = vst [vmem:[%s227] sm:$0xff] %v2235
      %2244 = vst [vmem:[%s227 + $0x8] sm:$0xff] %v2236
      %2245 = vst [vmem:[%s227 + $0x10] sm:$0xff] %v2237
      %2246 = vst [vmem:[%s227 + $0x18] sm:$0xff] %v2238
      %2247 = vst [vmem:[%s227 + $0x20] sm:$0xff] %v2239
      %2248 = vst [vmem:[%s227 + $0x28] sm:$0xff] %v2240
      %2249 = vst [vmem:[%s227 + $0x30] sm:$0xff] %v2241
      %2250 = vst [vmem:[%s227 + $0x38] sm:$0xff] %v2242
      %s2251 = smul.u32 4, %s14
      %p2252 = scmp.lt.s32.totalorder %s2251, 7
      %s2253 = scalar_select %p2252, %s2251, 7
      %s2254 = smul.addr %s2253, 2
      %s2255 = smul.addr %s2254, 8
      %s2256 = scalar_lea.vmem %s3, %s2255
      // Predicated region
      $region33: #{dilate_attention.1} parent=31 // pred_check
        %p2257 = pneg %p110
      $region34: #{dilate_attention.1} parent=31 // pred_check_branch
        %2259 = sbr.rel (%p2257) target = $region36
      $region35: #{dilate_attention.1} parent=31 // pred_region
        %s2260 = smul.u32 4, %s14
      $region36: #{dilate_attention.1} parent=31 // pred_fallthru
        _
    $region32: #{dilate_attention.1} parent=5 // pred_fallthru
      _
    %p2261 = scmp.le.s32.totalorder 2, %s9
    // Predicated region
    $region37: #{dilate_attention.1} parent=5 // pred_check
      %p2262 = pneg %p2261
    $region38: #{dilate_attention.1} parent=5 // pred_check_branch
      %2264 = sbr.rel (%p2262) target = $region40
    $region39: #{dilate_attention.1} parent=5 // pred_region
      %s2265 = ssub.s32 %s9, 2
      // Predicated region
      $region41: #{dilate_attention.1} parent=39 // pred_check
        %p2266 = pneg %p116
      $region42: #{dilate_attention.1} parent=39 // pred_check_branch
        %2268 = sbr.rel (%p2266) target = $region44
      $region43: #{dilate_attention.1} parent=39 // pred_region
        %s2269 = smul.u32 4, %s15
        %p2270 = scmp.lt.s32.totalorder %s2269, 7
        %s2271 = scalar_select %p2270, %s2269, 7
        %s2272 = smul.addr %s2271, 2
        %s2273 = smul.addr %s2272, 8
        %s2274 = scalar_lea.vmem %s3, %s2273
      $region44: #{dilate_attention.1} parent=39 // pred_fallthru
        _
    $region40: #{dilate_attention.1} parent=5 // pred_fallthru
      _
  $region6: #{dilate_attention.1} parent=0 // loop_footer
    %s13 = sadd.s32 1, %s9
  $region7: #{dilate_attention.1} parent=0 // loop_footer_branch
    %8 = sbr.rel target = $region3
  $region8: #{dilate_attention.1} parent=0 // loop_exit
    _

</llo_original>
